<compile_context>
chip_gen: v7x
topology: tpu7x:2x2x1
jax: 0.10.0
libtpu: 0.0.40
codegen_flags: <defaults>
</compile_context>

<pallas_src>
import functools

import jax
import jax.numpy as jnp
from jax.experimental import pallas as pl
from jax.experimental.pallas import tpu as pltpu

EMBED_DIM = 64
NUM_HEADS = 8
HEAD_DIM = EMBED_DIM // NUM_HEADS
PATCH = 8
IN_CH = 3
MLP_HIDDEN = 100
NUM_CLASSES = 10
LANE_PAD = 128            # lane-dense width for the MLP stack / output
N_STACKED = 3             # two hidden MLP layers + classifier (padded to 128)

# Row-tiling gates (perf review): stay unsplit unless every block still holds
# >= MIN_BLOCK_ROWS rows (amortizes resident-weight DMA per TensorCore); cap
# block rows so VMEM stays bounded on v7x (64 MiB).
MIN_BLOCK_ROWS = 256
MAX_BLOCK_ROWS = 1024


def mlp_attention_kernel(x_ref, w_tok_ref, b_tok_ref, w_qkv_ref, b_qkv_ref,
                         hsum_ref, hexp_ref, w1_ref, b1_ref, wh_ref, bh_ref,
                         out_ref, *, nb, np_tokens):
    # x_ref   : (1, m, Kd) f32, m = nb * np_tokens (nb images in this block)
    # w_tok   : (Kd, E)  bf16  fused patch-embed @ linear_1
    # b_tok   : (1, E)   f32
    # w_qkv   : (3, E, E) bf16 [Wq*scale | Wk | Wv]
    # b_qkv   : (3, 1, E) f32
    # hsum    : (E, H)   f32  0/1 head-segment-sum matrix
    # hexp    : (H, E)   f32  0/1 head->lane broadcast matrix (= hsum.T)
    # w1_ref  : (E, 128) bf16 out_proj fused with first MLP Linear (padded)
    # wh_ref  : (3,128,128) bf16 padded [linear2 | linear3 | classifier]
    # bh_ref  : (3,1,128)  f32 padded biases
    # out_ref : (1, m, 128) f32 lane-dense logits (cols >= num_classes zero)
    f32 = jnp.float32
    bf16 = jnp.bfloat16
    m = nb * np_tokens
    xp = x_ref[0]                                                  # (m, Kd)

    # (1) patch-embed + linear_1 (host-fused) -> tokens.  bf16 only at MXU.
    tok = jnp.dot(xp.astype(bf16), w_tok_ref[...],
                  preferred_element_type=f32) + b_tok_ref[...]     # (m, E) f32

    # (2) q/k/v as three separate dots (no sub-vreg lane slicing of a wide
    #     qkv); the 1/sqrt(hd) scale is folded into Wq/bq on the host.
    tok16 = tok.astype(bf16)
    q = jnp.dot(tok16, w_qkv_ref[0], preferred_element_type=f32) + b_qkv_ref[0]
    k = jnp.dot(tok16, w_qkv_ref[1], preferred_element_type=f32) + b_qkv_ref[1]
    v = jnp.dot(tok16, w_qkv_ref[2], preferred_element_type=f32) + b_qkv_ref[2]

    # (3) transpose-free multi-head attention.
    #     Per key-slot j: broadcast that key row across its image's query rows
    #     (VPU), contract per head with one 0/1 matmul (MXU), softmax across
    #     the np_tokens key slots elementwise in f32.
    q3 = q.reshape(nb, np_tokens, EMBED_DIM)
    k3 = k.reshape(nb, np_tokens, EMBED_DIM)
    v3 = v.reshape(nb, np_tokens, EMBED_DIM)

    prods = [(q3 * k3[:, j:j + 1, :]).reshape(m, EMBED_DIM)
             for j in range(np_tokens)]                            # q*k per slot
    s_cat = jnp.dot(jnp.concatenate(prods, axis=0), hsum_ref[...],
                    preferred_element_type=f32)                    # (Np*m, H)
    s = [s_cat[j * m:(j + 1) * m] for j in range(np_tokens)]       # (m, H) each

    mx = s[0]
    for j in range(1, np_tokens):
        mx = jnp.maximum(mx, s[j])
    es = [jnp.exp(sj - mx) for sj in s]
    denom = es[0]
    for j in range(1, np_tokens):
        denom = denom + es[j]
    # approx reciprocal runs on the EUP slot; deliberate small deviation from
    # an exact softmax (well inside the validation tolerance).
    inv = pl.reciprocal(denom, approx=True)
    ps = [ej * inv for ej in es]                                   # (m, H) each

    # Broadcast per-head probabilities across that head's hd lanes with one
    # 0/1 matmul, weight V per key slot on the VPU, and sum over slots.
    p_cat = jnp.concatenate(ps, axis=0)                            # (Np*m, H)
    pexp_cat = jnp.dot(p_cat, hexp_ref[...],
                       preferred_element_type=f32)                 # (Np*m, E)
    o3 = None
    for j in range(np_tokens):
        pj3 = pexp_cat[j * m:(j + 1) * m].reshape(nb, np_tokens, EMBED_DIM)
        term = pj3 * v3[:, j:j + 1, :]
        o3 = term if o3 is None else o3 + term
    o = o3.reshape(m, EMBED_DIM)                                   # (m, E) f32

    # (4) fused out_proj + first MLP Linear (lane-dense 128), then the padded
    #     hidden layers and classifier.
    h = jnp.dot(o.astype(bf16), w1_ref[...],
                preferred_element_type=f32) + b1_ref[...]
    h = jnp.maximum(h, 0.0)
    for l in range(N_STACKED):
        h = jnp.dot(h.astype(bf16), wh_ref[l],
                    preferred_element_type=f32) + bh_ref[l]
        if l < N_STACKED - 1:
            h = jnp.maximum(h, 0.0)
    out_ref[0] = h


def im2col_patches(x_nchw):
    B, C, H, W = x_nchw.shape
    Hp, Wp = H // PATCH, W // PATCH
    p = x_nchw.reshape(B, C, Hp, PATCH, Wp, PATCH)
    p = p.transpose(0, 2, 4, 1, 3, 5)                    # (B, Hp, Wp, C, P, P)
    return p.reshape(B, Hp * Wp, C * PATCH * PATCH)      # (B, Np, Kd)


def prepare_fused_params(p):
    """Host-side algebraic fusion, zero padding and bf16 weight casts."""
    f32 = jnp.float32
    bf16 = jnp.bfloat16
    scale = 1.0 / (HEAD_DIM ** 0.5)

    # stage 1: patch conv-as-matmul fused with linear_1
    w_tok = p["wp"] @ p["w1"]                              # (Kd, E)
    b_tok = p["bp"] @ p["w1"] + p["b1"]                    # (1, E)
    # stage 2: separate q/k/v projections, scale folded into Wq/bq
    w_qkv = jnp.stack([p["wq"] * scale, p["wk"], p["wv"]])  # (3, E, E)
    b_qkv = jnp.stack([p["bq"] * scale, p["bk"], p["bv"]])  # (3, 1, E)

    # 0/1 head-segment matrices (exact) for the transpose-free attention.
    c = jnp.arange(EMBED_DIM)[:, None] // HEAD_DIM
    hh = jnp.arange(NUM_HEADS)[None, :]
    head_sum = (c == hh).astype(f32)                       # (E, H)
    head_exp = head_sum.T                                  # (H, E)

    # out_proj fused with the first MLP Linear (no nonlinearity in between).
    w1f = p["wo"] @ p["l1_w"]                              # (E, 100)
    b1f = p["bo"] @ p["l1_w"] + p["l1_b"]                  # (1, 100)

    def pad_to(a, rows, cols):
        return jnp.pad(a, ((0, rows - a.shape[0]), (0, cols - a.shape[1])))

    w1f = pad_to(w1f, EMBED_DIM, LANE_PAD)
    b1f = pad_to(b1f, 1, LANE_PAD)
    wh = jnp.stack([pad_to(p["l2_w"], LANE_PAD, LANE_PAD),
                    pad_to(p["l3_w"], LANE_PAD, LANE_PAD),
                    pad_to(p["l4_w"], LANE_PAD, LANE_PAD)])   # (3,128,128)
    bh = jnp.stack([pad_to(p["l2_b"], 1, LANE_PAD),
                    pad_to(p["l3_b"], 1, LANE_PAD),
                    pad_to(p["l4_b"], 1, LANE_PAD)])          # (3,1,128)

    # bf16 only for MXU weight operands; biases / head matrices stay f32.
    return [w_tok.astype(bf16), b_tok.astype(f32),
            w_qkv.astype(bf16), b_qkv.astype(f32),
            head_sum, head_exp,
            w1f.astype(bf16), b1f.astype(f32),
            wh.astype(bf16), bh.astype(f32)]


def _choose_images_per_block(B, np_tokens):
    """Gate the row split: one block unless each block keeps >= MIN_BLOCK_ROWS
    full-sublane rows; cap block rows at MAX_BLOCK_ROWS for v7x VMEM."""
    rows = B * np_tokens
    if rows <= MAX_BLOCK_ROWS:
        return B
    best = B
    for d in range(1, B + 1):
        if B % d:
            continue
        r = d * np_tokens
        if r % 8 == 0 and MIN_BLOCK_ROWS <= r <= MAX_BLOCK_ROWS:
            best = d
    return best


def mlp_attention(x_nchw, params):
    patches = im2col_patches(x_nchw).astype(jnp.float32)     # (B, Np, Kd)
    B, Np, Kd = patches.shape

    imgs_per_block = _choose_images_per_block(B, Np)
    n_blocks = B // imgs_per_block
    rows = imgs_per_block * Np
    x_rows = patches.reshape(n_blocks, rows, Kd)

    weights = prepare_fused_params(params)

    def full_spec(a):
        ndim = a.ndim
        return pl.BlockSpec(a.shape, lambda i: (0,) * ndim)

    kernel = functools.partial(mlp_attention_kernel,
                               nb=imgs_per_block, np_tokens=Np)
    out = pl.pallas_call(
        kernel,
        out_shape=jax.ShapeDtypeStruct((n_blocks, rows, LANE_PAD), jnp.float32),
        grid=(n_blocks,),
        in_specs=[pl.BlockSpec((1, rows, Kd), lambda i: (i, 0, 0))]
                 + [full_spec(w) for w in weights],
        out_specs=pl.BlockSpec((1, rows, LANE_PAD), lambda i: (i, 0, 0)),
        compiler_params=pltpu.CompilerParams(
            # megacore split only when the gated tiling actually produced
            # multiple (large) blocks; otherwise a single arbitrary step.
            dimension_semantics=(("parallel",) if n_blocks > 1
                                 else ("arbitrary",)),
            vmem_limit_bytes=32 * 1024 * 1024,
        ),
    )(x_rows, *weights)

    # lane-dense output -> module-semantic (B, Np, num_classes)
    return out.reshape(B, Np, LANE_PAD)[:, :, :NUM_CLASSES]


def reference(x_nchw, p):
    """Plain-JAX f32 reference implementing the PyTorch MLP_Attention math."""
    patches = im2col_patches(x_nchw).astype(jnp.float32)     # (B, Np, Kd)
    tok = patches @ p["wp"] + p["bp"]
    tok = tok @ p["w1"] + p["b1"]
    q = tok @ p["wq"] + p["bq"]
    k = tok @ p["wk"] + p["bk"]
    v = tok @ p["wv"] + p["bv"]
    B, Np, E = q.shape
    qh = q.reshape(B, Np, NUM_HEADS, HEAD_DIM).transpose(0, 2, 1, 3)
    kh = k.reshape(B, Np, NUM_HEADS, HEAD_DIM).transpose(0, 2, 1, 3)
    vh = v.reshape(B, Np, NUM_HEADS, HEAD_DIM).transpose(0, 2, 1, 3)
    s = jnp.einsum("bhqd,bhkd->bhqk", qh, kh) / (HEAD_DIM ** 0.5)
    a = jax.nn.softmax(s, axis=-1)
    o = jnp.einsum("bhqk,bhkd->bhqd", a, vh)
    o = o.transpose(0, 2, 1, 3).reshape(B, Np, E)
    y = o @ p["wo"] + p["bo"]
    h = jax.nn.relu(y @ p["l1_w"] + p["l1_b"])
    h = jax.nn.relu(h @ p["l2_w"] + p["l2_b"])
    h = jax.nn.relu(h @ p["l3_w"] + p["l3_b"])
    return h @ p["l4_w"] + p["l4_b"]


def init_params(key):
    Kd = IN_CH * PATCH * PATCH
    ks = jax.random.split(key, 20)
    scale = 0.1

    def w(k, shape):
        return (scale * jax.random.normal(k, shape)).astype(jnp.float32)

    return {
        # patch conv (E,3,P,P) flattened & transposed for right-multiply
        "wp": w(ks[0], (Kd, EMBED_DIM)), "bp": w(ks[1], (1, EMBED_DIM)),
        "w1": w(ks[2], (EMBED_DIM, EMBED_DIM)), "b1": w(ks[3], (1, EMBED_DIM)),
        # MHA in_proj chunks (.T) and out_proj (.T)
        "wq": w(ks[4], (EMBED_DIM, EMBED_DIM)), "bq": w(ks[5], (1, EMBED_DIM)),
        "wk": w(ks[6], (EMBED_DIM, EMBED_DIM)), "bk": w(ks[7], (1, EMBED_DIM)),
        "wv": w(ks[8], (EMBED_DIM, EMBED_DIM)), "bv": w(ks[9], (1, EMBED_DIM)),
        "wo": w(ks[10], (EMBED_DIM, EMBED_DIM)), "bo": w(ks[11], (1, EMBED_DIM)),
        # MLP head: 64 -> 100 -> 100 -> 100 -> num_classes
        "l1_w": w(ks[12], (EMBED_DIM, MLP_HIDDEN)), "l1_b": w(ks[13], (1, MLP_HIDDEN)),
        "l2_w": w(ks[14], (MLP_HIDDEN, MLP_HIDDEN)), "l2_b": w(ks[15], (1, MLP_HIDDEN)),
        "l3_w": w(ks[16], (MLP_HIDDEN, MLP_HIDDEN)), "l3_b": w(ks[17], (1, MLP_HIDDEN)),
        "l4_w": w(ks[18], (MLP_HIDDEN, NUM_CLASSES)), "l4_b": w(ks[19], (1, NUM_CLASSES)),
    }


if __name__ == "__main__":
    key = jax.random.PRNGKey(0)
    k_x, k_p = jax.random.split(key)
    # (B=2, C=3, H=16, W=16) -> Np = (16/8)^2 = 4 patches per image
    x = jax.random.normal(k_x, (2, IN_CH, 16, 16), dtype=jnp.float32)
    params = init_params(k_p)

    out = jax.block_until_ready(mlp_attention(x, params))
    ref = reference(x, params)

    assert out.shape == (2, 4, NUM_CLASSES), out.shape
    err = float(jnp.max(jnp.abs(out - ref)))
    # bf16 weight storage + host-side algebraic fusion shift f32 rounding vs.
    # the pure-f32 reference, so the tolerance is correspondingly looser.
    assert jnp.allclose(out, ref, atol=4e-2, rtol=4e-2), err
    print("KERNEL_OK")
</pallas_src>

<mosaic_0001>
module attributes {stable_mosaic.version = 11 : i64} {
  func.func @mlp_attention_kernel(%arg0: i32, %arg1: memref<1x8x192xf32, #tpu.memory_space<vmem>>, %arg2: memref<192x64xbf16, #tpu.memory_space<vmem>>, %arg3: memref<1x64xf32, #tpu.memory_space<vmem>>, %arg4: memref<3x64x64xbf16, #tpu.memory_space<vmem>>, %arg5: memref<3x1x64xf32, #tpu.memory_space<vmem>>, %arg6: memref<64x8xf32, #tpu.memory_space<vmem>>, %arg7: memref<8x64xf32, #tpu.memory_space<vmem>>, %arg8: memref<64x128xbf16, #tpu.memory_space<vmem>>, %arg9: memref<1x128xf32, #tpu.memory_space<vmem>>, %arg10: memref<3x128x128xbf16, #tpu.memory_space<vmem>>, %arg11: memref<3x1x128xf32, #tpu.memory_space<vmem>>, %arg12: memref<1x8x128xf32, #tpu.memory_space<vmem>>) attributes {dimension_semantics = [#tpu.dimension_semantics<arbitrary>], iteration_bounds = array<i64: 1>, scalar_prefetch = 0 : i64, scratch_operands = 0 : i64, tpu.core_type = #tpu.core_type<tc>, window_params = [{transform_indices = @transform_0, window_bounds = array<i64: 1, 8, 192>}, {pipeline_mode = #tpu.pipeline_mode<synchronous>, transform_indices = @transform_1, window_bounds = array<i64: 192, 64>}, {pipeline_mode = #tpu.pipeline_mode<synchronous>, transform_indices = @transform_2, window_bounds = array<i64: 1, 64>}, {pipeline_mode = #tpu.pipeline_mode<synchronous>, transform_indices = @transform_3, window_bounds = array<i64: 3, 64, 64>}, {pipeline_mode = #tpu.pipeline_mode<synchronous>, transform_indices = @transform_4, window_bounds = array<i64: 3, 1, 64>}, {pipeline_mode = #tpu.pipeline_mode<synchronous>, transform_indices = @transform_5, window_bounds = array<i64: 64, 8>}, {pipeline_mode = #tpu.pipeline_mode<synchronous>, transform_indices = @transform_6, window_bounds = array<i64: 8, 64>}, {pipeline_mode = #tpu.pipeline_mode<synchronous>, transform_indices = @transform_7, window_bounds = array<i64: 64, 128>}, {pipeline_mode = #tpu.pipeline_mode<synchronous>, transform_indices = @transform_8, window_bounds = array<i64: 1, 128>}, {pipeline_mode = #tpu.pipeline_mode<synchronous>, transform_indices = @transform_9, window_bounds = array<i64: 3, 128, 128>}, {pipeline_mode = #tpu.pipeline_mode<synchronous>, transform_indices = @transform_10, window_bounds = array<i64: 3, 1, 128>}, {transform_indices = @transform_11, window_bounds = array<i64: 1, 8, 128>}]} {
    %c0 = arith.constant 0 : index
    %c0_0 = arith.constant 0 : index
    %c0_1 = arith.constant 0 : index
    %0 = vector.load %arg1[%c0, %c0_0, %c0_1] : memref<1x8x192xf32, #tpu.memory_space<vmem>>, vector<1x8x192xf32>
    %1 = vector.shape_cast %0 : vector<1x8x192xf32> to vector<8x192xf32>
    %2 = arith.truncf %1 : vector<8x192xf32> to vector<8x192xbf16>
    %c0_2 = arith.constant 0 : index
    %c0_3 = arith.constant 0 : index
    %3 = vector.load %arg2[%c0_2, %c0_3] : memref<192x64xbf16, #tpu.memory_space<vmem>>, vector<192x64xbf16>
    %cst = arith.constant dense<0.000000e+00> : vector<8x64xf32>
    %4 = tpu.matmul %2, %3, %cst {dimension_numbers = #tpu.dot_dimension_numbers<[1], [0], [0], [1], [0, 0, 1, 1], [], []>} : vector<8x192xbf16>, vector<192x64xbf16>, vector<8x64xf32> -> vector<8x64xf32>
    %c0_4 = arith.constant 0 : index
    %c0_5 = arith.constant 0 : index
    %5 = vector.load %arg3[%c0_4, %c0_5] : memref<1x64xf32, #tpu.memory_space<vmem>>, vector<1x64xf32>
    %6 = vector.broadcast %5 : vector<1x64xf32> to vector<8x64xf32>
    %7 = arith.addf %4, %6 : vector<8x64xf32>
    %8 = arith.truncf %7 : vector<8x64xf32> to vector<8x64xbf16>
    %c0_6 = arith.constant 0 : index
    %c0_7 = arith.constant 0 : index
    %c0_8 = arith.constant 0 : index
    %9 = vector.load %arg4[%c0_6, %c0_7, %c0_8] : memref<3x64x64xbf16, #tpu.memory_space<vmem>>, vector<1x64x64xbf16>
    %10 = vector.shape_cast %9 : vector<1x64x64xbf16> to vector<64x64xbf16>
    %cst_9 = arith.constant dense<0.000000e+00> : vector<8x64xf32>
    %11 = tpu.matmul %8, %10, %cst_9 {dimension_numbers = #tpu.dot_dimension_numbers<[1], [0], [0], [1], [0, 0, 1, 1], [], []>} : vector<8x64xbf16>, vector<64x64xbf16>, vector<8x64xf32> -> vector<8x64xf32>
    %c0_10 = arith.constant 0 : index
    %c0_11 = arith.constant 0 : index
    %c0_12 = arith.constant 0 : index
    %12 = vector.load %arg5[%c0_10, %c0_11, %c0_12] : memref<3x1x64xf32, #tpu.memory_space<vmem>>, vector<1x1x64xf32>
    %13 = vector.shape_cast %12 : vector<1x1x64xf32> to vector<1x64xf32>
    %14 = vector.broadcast %13 : vector<1x64xf32> to vector<8x64xf32>
    %15 = arith.addf %11, %14 : vector<8x64xf32>
    %c1 = arith.constant 1 : index
    %c0_13 = arith.constant 0 : index
    %c0_14 = arith.constant 0 : index
    %16 = vector.load %arg4[%c1, %c0_13, %c0_14] : memref<3x64x64xbf16, #tpu.memory_space<vmem>>, vector<1x64x64xbf16>
    %17 = vector.shape_cast %16 : vector<1x64x64xbf16> to vector<64x64xbf16>
    %cst_15 = arith.constant dense<0.000000e+00> : vector<8x64xf32>
    %18 = tpu.matmul %8, %17, %cst_15 {dimension_numbers = #tpu.dot_dimension_numbers<[1], [0], [0], [1], [0, 0, 1, 1], [], []>} : vector<8x64xbf16>, vector<64x64xbf16>, vector<8x64xf32> -> vector<8x64xf32>
    %c1_16 = arith.constant 1 : index
    %c0_17 = arith.constant 0 : index
    %c0_18 = arith.constant 0 : index
    %19 = vector.load %arg5[%c1_16, %c0_17, %c0_18] : memref<3x1x64xf32, #tpu.memory_space<vmem>>, vector<1x1x64xf32>
    %20 = vector.shape_cast %19 : vector<1x1x64xf32> to vector<1x64xf32>
    %21 = vector.broadcast %20 : vector<1x64xf32> to vector<8x64xf32>
    %22 = arith.addf %18, %21 : vector<8x64xf32>
    %c2 = arith.constant 2 : index
    %c0_19 = arith.constant 0 : index
    %c0_20 = arith.constant 0 : index
    %23 = vector.load %arg4[%c2, %c0_19, %c0_20] : memref<3x64x64xbf16, #tpu.memory_space<vmem>>, vector<1x64x64xbf16>
    %24 = vector.shape_cast %23 : vector<1x64x64xbf16> to vector<64x64xbf16>
    %cst_21 = arith.constant dense<0.000000e+00> : vector<8x64xf32>
    %25 = tpu.matmul %8, %24, %cst_21 {dimension_numbers = #tpu.dot_dimension_numbers<[1], [0], [0], [1], [0, 0, 1, 1], [], []>} : vector<8x64xbf16>, vector<64x64xbf16>, vector<8x64xf32> -> vector<8x64xf32>
    %c2_22 = arith.constant 2 : index
    %c0_23 = arith.constant 0 : index
    %c0_24 = arith.constant 0 : index
    %26 = vector.load %arg5[%c2_22, %c0_23, %c0_24] : memref<3x1x64xf32, #tpu.memory_space<vmem>>, vector<1x1x64xf32>
    %27 = vector.shape_cast %26 : vector<1x1x64xf32> to vector<1x64xf32>
    %28 = vector.broadcast %27 : vector<1x64xf32> to vector<8x64xf32>
    %29 = arith.addf %25, %28 : vector<8x64xf32>
    %30 = vector.shape_cast %15 : vector<8x64xf32> to vector<2x4x64xf32>
    %31 = vector.shape_cast %22 : vector<8x64xf32> to vector<2x4x64xf32>
    %32 = vector.shape_cast %29 : vector<8x64xf32> to vector<2x4x64xf32>
    %33 = vector.extract_strided_slice %31 {offsets = [0, 0, 0], sizes = [2, 1, 64], strides = [1, 1, 1]} : vector<2x4x64xf32> to vector<2x1x64xf32>
    %34 = vector.broadcast %33 : vector<2x1x64xf32> to vector<2x4x64xf32>
    %35 = arith.mulf %30, %34 : vector<2x4x64xf32>
    %36 = vector.shape_cast %35 : vector<2x4x64xf32> to vector<8x64xf32>
    %37 = vector.extract_strided_slice %31 {offsets = [0, 1, 0], sizes = [2, 1, 64], strides = [1, 1, 1]} : vector<2x4x64xf32> to vector<2x1x64xf32>
    %38 = vector.broadcast %37 : vector<2x1x64xf32> to vector<2x4x64xf32>
    %39 = arith.mulf %30, %38 : vector<2x4x64xf32>
    %40 = vector.shape_cast %39 : vector<2x4x64xf32> to vector<8x64xf32>
    %41 = vector.extract_strided_slice %31 {offsets = [0, 2, 0], sizes = [2, 1, 64], strides = [1, 1, 1]} : vector<2x4x64xf32> to vector<2x1x64xf32>
    %42 = vector.broadcast %41 : vector<2x1x64xf32> to vector<2x4x64xf32>
    %43 = arith.mulf %30, %42 : vector<2x4x64xf32>
    %44 = vector.shape_cast %43 : vector<2x4x64xf32> to vector<8x64xf32>
    %45 = vector.extract_strided_slice %31 {offsets = [0, 3, 0], sizes = [2, 1, 64], strides = [1, 1, 1]} : vector<2x4x64xf32> to vector<2x1x64xf32>
    %46 = vector.broadcast %45 : vector<2x1x64xf32> to vector<2x4x64xf32>
    %47 = arith.mulf %30, %46 : vector<2x4x64xf32>
    %48 = vector.shape_cast %47 : vector<2x4x64xf32> to vector<8x64xf32>
    %49 = tpu.concatenate %36, %40, %44, %48 in 0 : vector<8x64xf32>, vector<8x64xf32>, vector<8x64xf32>, vector<8x64xf32> -> vector<32x64xf32>
    %c0_25 = arith.constant 0 : index
    %c0_26 = arith.constant 0 : index
    %50 = vector.load %arg6[%c0_25, %c0_26] : memref<64x8xf32, #tpu.memory_space<vmem>>, vector<64x8xf32>
    %cst_27 = arith.constant dense<0.000000e+00> : vector<32x8xf32>
    %51 = tpu.matmul %49, %50, %cst_27 {dimension_numbers = #tpu.dot_dimension_numbers<[1], [0], [0], [1], [0, 0, 1, 1], [], []>} : vector<32x64xf32>, vector<64x8xf32>, vector<32x8xf32> -> vector<32x8xf32>
    %52 = vector.extract_strided_slice %51 {offsets = [0, 0], sizes = [8, 8], strides = [1, 1]} : vector<32x8xf32> to vector<8x8xf32>
    %53 = vector.extract_strided_slice %51 {offsets = [8, 0], sizes = [8, 8], strides = [1, 1]} : vector<32x8xf32> to vector<8x8xf32>
    %54 = vector.extract_strided_slice %51 {offsets = [16, 0], sizes = [8, 8], strides = [1, 1]} : vector<32x8xf32> to vector<8x8xf32>
    %55 = vector.extract_strided_slice %51 {offsets = [24, 0], sizes = [8, 8], strides = [1, 1]} : vector<32x8xf32> to vector<8x8xf32>
    %56 = arith.maximumf %52, %53 : vector<8x8xf32>
    %57 = arith.maximumf %56, %54 : vector<8x8xf32>
    %58 = arith.maximumf %57, %55 : vector<8x8xf32>
    %59 = arith.subf %52, %58 : vector<8x8xf32>
    %60 = math.exp %59 : vector<8x8xf32>
    %61 = arith.subf %53, %58 : vector<8x8xf32>
    %62 = math.exp %61 : vector<8x8xf32>
    %63 = arith.subf %54, %58 : vector<8x8xf32>
    %64 = math.exp %63 : vector<8x8xf32>
    %65 = arith.subf %55, %58 : vector<8x8xf32>
    %66 = math.exp %65 : vector<8x8xf32>
    %67 = arith.addf %60, %62 : vector<8x8xf32>
    %68 = arith.addf %67, %64 : vector<8x8xf32>
    %69 = arith.addf %68, %66 : vector<8x8xf32>
    %70 = tpu.reciprocal %69 {approx = true} : vector<8x8xf32> -> vector<8x8xf32>
    %71 = arith.mulf %60, %70 : vector<8x8xf32>
    %72 = arith.mulf %62, %70 : vector<8x8xf32>
    %73 = arith.mulf %64, %70 : vector<8x8xf32>
    %74 = arith.mulf %66, %70 : vector<8x8xf32>
    %75 = tpu.concatenate %71, %72, %73, %74 in 0 : vector<8x8xf32>, vector<8x8xf32>, vector<8x8xf32>, vector<8x8xf32> -> vector<32x8xf32>
    %c0_28 = arith.constant 0 : index
    %c0_29 = arith.constant 0 : index
    %76 = vector.load %arg7[%c0_28, %c0_29] : memref<8x64xf32, #tpu.memory_space<vmem>>, vector<8x64xf32>
    %cst_30 = arith.constant dense<0.000000e+00> : vector<32x64xf32>
    %77 = tpu.matmul %75, %76, %cst_30 {dimension_numbers = #tpu.dot_dimension_numbers<[1], [0], [0], [1], [0, 0, 1, 1], [], []>} : vector<32x8xf32>, vector<8x64xf32>, vector<32x64xf32> -> vector<32x64xf32>
    %78 = vector.extract_strided_slice %77 {offsets = [0, 0], sizes = [8, 64], strides = [1, 1]} : vector<32x64xf32> to vector<8x64xf32>
    %79 = vector.shape_cast %78 : vector<8x64xf32> to vector<2x4x64xf32>
    %80 = vector.extract_strided_slice %32 {offsets = [0, 0, 0], sizes = [2, 1, 64], strides = [1, 1, 1]} : vector<2x4x64xf32> to vector<2x1x64xf32>
    %81 = vector.broadcast %80 : vector<2x1x64xf32> to vector<2x4x64xf32>
    %82 = arith.mulf %79, %81 : vector<2x4x64xf32>
    %83 = vector.extract_strided_slice %77 {offsets = [8, 0], sizes = [8, 64], strides = [1, 1]} : vector<32x64xf32> to vector<8x64xf32>
    %84 = vector.shape_cast %83 : vector<8x64xf32> to vector<2x4x64xf32>
    %85 = vector.extract_strided_slice %32 {offsets = [0, 1, 0], sizes = [2, 1, 64], strides = [1, 1, 1]} : vector<2x4x64xf32> to vector<2x1x64xf32>
    %86 = vector.broadcast %85 : vector<2x1x64xf32> to vector<2x4x64xf32>
    %87 = arith.mulf %84, %86 : vector<2x4x64xf32>
    %88 = arith.addf %82, %87 : vector<2x4x64xf32>
    %89 = vector.extract_strided_slice %77 {offsets = [16, 0], sizes = [8, 64], strides = [1, 1]} : vector<32x64xf32> to vector<8x64xf32>
    %90 = vector.shape_cast %89 : vector<8x64xf32> to vector<2x4x64xf32>
    %91 = vector.extract_strided_slice %32 {offsets = [0, 2, 0], sizes = [2, 1, 64], strides = [1, 1, 1]} : vector<2x4x64xf32> to vector<2x1x64xf32>
    %92 = vector.broadcast %91 : vector<2x1x64xf32> to vector<2x4x64xf32>
    %93 = arith.mulf %90, %92 : vector<2x4x64xf32>
    %94 = arith.addf %88, %93 : vector<2x4x64xf32>
    %95 = vector.extract_strided_slice %77 {offsets = [24, 0], sizes = [8, 64], strides = [1, 1]} : vector<32x64xf32> to vector<8x64xf32>
    %96 = vector.shape_cast %95 : vector<8x64xf32> to vector<2x4x64xf32>
    %97 = vector.extract_strided_slice %32 {offsets = [0, 3, 0], sizes = [2, 1, 64], strides = [1, 1, 1]} : vector<2x4x64xf32> to vector<2x1x64xf32>
    %98 = vector.broadcast %97 : vector<2x1x64xf32> to vector<2x4x64xf32>
    %99 = arith.mulf %96, %98 : vector<2x4x64xf32>
    %100 = arith.addf %94, %99 : vector<2x4x64xf32>
    %101 = vector.shape_cast %100 : vector<2x4x64xf32> to vector<8x64xf32>
    %102 = arith.truncf %101 : vector<8x64xf32> to vector<8x64xbf16>
    %c0_31 = arith.constant 0 : index
    %c0_32 = arith.constant 0 : index
    %103 = vector.load %arg8[%c0_31, %c0_32] : memref<64x128xbf16, #tpu.memory_space<vmem>>, vector<64x128xbf16>
    %cst_33 = arith.constant dense<0.000000e+00> : vector<8x128xf32>
    %104 = tpu.matmul %102, %103, %cst_33 {dimension_numbers = #tpu.dot_dimension_numbers<[1], [0], [0], [1], [0, 0, 1, 1], [], []>} : vector<8x64xbf16>, vector<64x128xbf16>, vector<8x128xf32> -> vector<8x128xf32>
    %c0_34 = arith.constant 0 : index
    %c0_35 = arith.constant 0 : index
    %105 = vector.load %arg9[%c0_34, %c0_35] : memref<1x128xf32, #tpu.memory_space<vmem>>, vector<1x128xf32>
    %106 = vector.broadcast %105 : vector<1x128xf32> to vector<8x128xf32>
    %107 = arith.addf %104, %106 : vector<8x128xf32>
    %cst_36 = arith.constant 0.000000e+00 : f32
    %108 = vector.broadcast %cst_36 : f32 to vector<8x128xf32>
    %109 = arith.maximumf %107, %108 : vector<8x128xf32>
    %110 = arith.truncf %109 : vector<8x128xf32> to vector<8x128xbf16>
    %c0_37 = arith.constant 0 : index
    %c0_38 = arith.constant 0 : index
    %c0_39 = arith.constant 0 : index
    %111 = vector.load %arg10[%c0_37, %c0_38, %c0_39] : memref<3x128x128xbf16, #tpu.memory_space<vmem>>, vector<1x128x128xbf16>
    %112 = vector.shape_cast %111 : vector<1x128x128xbf16> to vector<128x128xbf16>
    %cst_40 = arith.constant dense<0.000000e+00> : vector<8x128xf32>
    %113 = tpu.matmul %110, %112, %cst_40 {dimension_numbers = #tpu.dot_dimension_numbers<[1], [0], [0], [1], [0, 0, 1, 1], [], []>} : vector<8x128xbf16>, vector<128x128xbf16>, vector<8x128xf32> -> vector<8x128xf32>
    %c0_41 = arith.constant 0 : index
    %c0_42 = arith.constant 0 : index
    %c0_43 = arith.constant 0 : index
    %114 = vector.load %arg11[%c0_41, %c0_42, %c0_43] : memref<3x1x128xf32, #tpu.memory_space<vmem>>, vector<1x1x128xf32>
    %115 = vector.shape_cast %114 : vector<1x1x128xf32> to vector<1x128xf32>
    %116 = vector.broadcast %115 : vector<1x128xf32> to vector<8x128xf32>
    %117 = arith.addf %113, %116 : vector<8x128xf32>
    %cst_44 = arith.constant 0.000000e+00 : f32
    %118 = vector.broadcast %cst_44 : f32 to vector<8x128xf32>
    %119 = arith.maximumf %117, %118 : vector<8x128xf32>
    %120 = arith.truncf %119 : vector<8x128xf32> to vector<8x128xbf16>
    %c1_45 = arith.constant 1 : index
    %c0_46 = arith.constant 0 : index
    %c0_47 = arith.constant 0 : index
    %121 = vector.load %arg10[%c1_45, %c0_46, %c0_47] : memref<3x128x128xbf16, #tpu.memory_space<vmem>>, vector<1x128x128xbf16>
    %122 = vector.shape_cast %121 : vector<1x128x128xbf16> to vector<128x128xbf16>
    %cst_48 = arith.constant dense<0.000000e+00> : vector<8x128xf32>
    %123 = tpu.matmul %120, %122, %cst_48 {dimension_numbers = #tpu.dot_dimension_numbers<[1], [0], [0], [1], [0, 0, 1, 1], [], []>} : vector<8x128xbf16>, vector<128x128xbf16>, vector<8x128xf32> -> vector<8x128xf32>
    %c1_49 = arith.constant 1 : index
    %c0_50 = arith.constant 0 : index
    %c0_51 = arith.constant 0 : index
    %124 = vector.load %arg11[%c1_49, %c0_50, %c0_51] : memref<3x1x128xf32, #tpu.memory_space<vmem>>, vector<1x1x128xf32>
    %125 = vector.shape_cast %124 : vector<1x1x128xf32> to vector<1x128xf32>
    %126 = vector.broadcast %125 : vector<1x128xf32> to vector<8x128xf32>
    %127 = arith.addf %123, %126 : vector<8x128xf32>
    %cst_52 = arith.constant 0.000000e+00 : f32
    %128 = vector.broadcast %cst_52 : f32 to vector<8x128xf32>
    %129 = arith.maximumf %127, %128 : vector<8x128xf32>
    %130 = arith.truncf %129 : vector<8x128xf32> to vector<8x128xbf16>
    %c2_53 = arith.constant 2 : index
    %c0_54 = arith.constant 0 : index
    %c0_55 = arith.constant 0 : index
    %131 = vector.load %arg10[%c2_53, %c0_54, %c0_55] : memref<3x128x128xbf16, #tpu.memory_space<vmem>>, vector<1x128x128xbf16>
    %132 = vector.shape_cast %131 : vector<1x128x128xbf16> to vector<128x128xbf16>
    %cst_56 = arith.constant dense<0.000000e+00> : vector<8x128xf32>
    %133 = tpu.matmul %130, %132, %cst_56 {dimension_numbers = #tpu.dot_dimension_numbers<[1], [0], [0], [1], [0, 0, 1, 1], [], []>} : vector<8x128xbf16>, vector<128x128xbf16>, vector<8x128xf32> -> vector<8x128xf32>
    %c2_57 = arith.constant 2 : index
    %c0_58 = arith.constant 0 : index
    %c0_59 = arith.constant 0 : index
    %134 = vector.load %arg11[%c2_57, %c0_58, %c0_59] : memref<3x1x128xf32, #tpu.memory_space<vmem>>, vector<1x1x128xf32>
    %135 = vector.shape_cast %134 : vector<1x1x128xf32> to vector<1x128xf32>
    %136 = vector.broadcast %135 : vector<1x128xf32> to vector<8x128xf32>
    %137 = arith.addf %133, %136 : vector<8x128xf32>
    %c0_60 = arith.constant 0 : index
    %c0_61 = arith.constant 0 : index
    %c0_62 = arith.constant 0 : index
    %138 = vector.load %arg12[%c0_60, %c0_61, %c0_62] : memref<1x8x128xf32, #tpu.memory_space<vmem>>, vector<1x8x128xf32>
    %139 = vector.shape_cast %138 : vector<1x8x128xf32> to vector<8x128xf32>
    %140 = vector.shape_cast %137 : vector<8x128xf32> to vector<1x8x128xf32>
    tpu.vector_store %arg12[%c0_60, %c0_61, %c0_62], %140 {strides = array<i32>} : memref<1x8x128xf32, #tpu.memory_space<vmem>>, vector<1x8x128xf32>,
    return
  }
  func.func @transform_0(%arg0: i32) -> (i32, i32, i32) {
    %c0_i32 = arith.constant 0 : i32
    %c0_i32_0 = arith.constant 0 : i32
    %c0_i32_1 = arith.constant 0 : i32
    return %arg0, %c0_i32, %c0_i32_0 : i32, i32, i32
  }
  func.func @transform_1(%arg0: i32) -> (i32, i32) {
    %c0_i32 = arith.constant 0 : i32
    %c0_i32_0 = arith.constant 0 : i32
    %c0_i32_1 = arith.constant 0 : i32
    return %c0_i32, %c0_i32_0 : i32, i32
  }
  func.func @transform_2(%arg0: i32) -> (i32, i32) {
    %c0_i32 = arith.constant 0 : i32
    %c0_i32_0 = arith.constant 0 : i32
    %c0_i32_1 = arith.constant 0 : i32
    return %c0_i32, %c0_i32_0 : i32, i32
  }
  func.func @transform_3(%arg0: i32) -> (i32, i32, i32) {
    %c0_i32 = arith.constant 0 : i32
    %c0_i32_0 = arith.constant 0 : i32
    %c0_i32_1 = arith.constant 0 : i32
    %c0_i32_2 = arith.constant 0 : i32
    return %c0_i32, %c0_i32_0, %c0_i32_1 : i32, i32, i32
  }
  func.func @transform_4(%arg0: i32) -> (i32, i32, i32) {
    %c0_i32 = arith.constant 0 : i32
    %c0_i32_0 = arith.constant 0 : i32
    %c0_i32_1 = arith.constant 0 : i32
    %c0_i32_2 = arith.constant 0 : i32
    return %c0_i32, %c0_i32_0, %c0_i32_1 : i32, i32, i32
  }
  func.func @transform_5(%arg0: i32) -> (i32, i32) {
    %c0_i32 = arith.constant 0 : i32
    %c0_i32_0 = arith.constant 0 : i32
    %c0_i32_1 = arith.constant 0 : i32
    return %c0_i32, %c0_i32_0 : i32, i32
  }
  func.func @transform_6(%arg0: i32) -> (i32, i32) {
    %c0_i32 = arith.constant 0 : i32
    %c0_i32_0 = arith.constant 0 : i32
    %c0_i32_1 = arith.constant 0 : i32
    return %c0_i32, %c0_i32_0 : i32, i32
  }
  func.func @transform_7(%arg0: i32) -> (i32, i32) {
    %c0_i32 = arith.constant 0 : i32
    %c0_i32_0 = arith.constant 0 : i32
    %c0_i32_1 = arith.constant 0 : i32
    return %c0_i32, %c0_i32_0 : i32, i32
  }
  func.func @transform_8(%arg0: i32) -> (i32, i32) {
    %c0_i32 = arith.constant 0 : i32
    %c0_i32_0 = arith.constant 0 : i32
    %c0_i32_1 = arith.constant 0 : i32
    return %c0_i32, %c0_i32_0 : i32, i32
  }
  func.func @transform_9(%arg0: i32) -> (i32, i32, i32) {
    %c0_i32 = arith.constant 0 : i32
    %c0_i32_0 = arith.constant 0 : i32
    %c0_i32_1 = arith.constant 0 : i32
    %c0_i32_2 = arith.constant 0 : i32
    return %c0_i32, %c0_i32_0, %c0_i32_1 : i32, i32, i32
  }
  func.func @transform_10(%arg0: i32) -> (i32, i32, i32) {
    %c0_i32 = arith.constant 0 : i32
    %c0_i32_0 = arith.constant 0 : i32
    %c0_i32_1 = arith.constant 0 : i32
    %c0_i32_2 = arith.constant 0 : i32
    return %c0_i32, %c0_i32_0, %c0_i32_1 : i32, i32, i32
  }
  func.func @transform_11(%arg0: i32) -> (i32, i32, i32) {
    %c0_i32 = arith.constant 0 : i32
    %c0_i32_0 = arith.constant 0 : i32
    %c0_i32_1 = arith.constant 0 : i32
    return %arg0, %c0_i32, %c0_i32_0 : i32, i32, i32
  }
}

</mosaic_0001>

<llo_original>
// kernel: tpu_custom_call.1
$region0: #{tpu_custom_call.1}
  #allocation0 [shape = 'u32[]', space=smem, size = 0x4, offset = 0x4, fixed_abs, tag = 'smem constant byte address 0x4 - core index']
  #allocation1 [shape = 'u32[144,128]{1,0:T(1,128)}', space=vmem, size = 0x12000, scoped, tag = 'internal scratch']
  %s0 = inlined_call_operand.vmem [shape: f32[1,8,192], index: 0, kind: input, shape index: {}]
  %s1 = inlined_call_operand.vmem [shape: bf16[192,64], index: 1, kind: input, shape index: {}]
  %s2 = inlined_call_operand.vmem [shape: f32[1,64], index: 2, kind: input, shape index: {}]
  %s3 = inlined_call_operand.hbm [shape: bf16[3,64,64], index: 3, kind: input, shape index: {}]
  %s4 = inlined_call_operand.vmem [shape: f32[3,1,64], index: 4, kind: input, shape index: {}]
  %s5 = inlined_call_operand.vmem [shape: f32[64,8], index: 5, kind: input, shape index: {}]
  %s6 = inlined_call_operand.vmem [shape: f32[8,64], index: 6, kind: input, shape index: {}]
  %s7 = inlined_call_operand.vmem [shape: bf16[64,128], index: 7, kind: input, shape index: {}]
  %s8 = inlined_call_operand.vmem [shape: f32[1,128], index: 8, kind: input, shape index: {}]
  %s9 = inlined_call_operand.vmem [shape: bf16[3,128,128], index: 9, kind: input, shape index: {}]
  %s10 = inlined_call_operand.vmem [shape: f32[3,1,128], index: 10, kind: input, shape index: {}]
  %s11 = inlined_call_operand.hbm [shape: f32[1,8,128], index: 11, kind: output, shape index: {}]
  %s12 = sld [smem:[#allocation0]]
  $region58: #{tpu_custom_call.1} parent=0
    _
  %s14 = ssub.s32 1, %s12
  %s15 = scalar_select 0, %s14, %s12
  $region1: #{tpu_custom_call.1} parent=0
    #allocation2 [shape = 'u8[49152]{0}', space=vmem, size = 0xc000, scoped, tag = 'input window, operand 3, single buffered']
    #allocation3 [shape = 's32[1]{0}', space=sflag, size = 0x4, scoped, tag = 'scoped memory for tpu_custom_call.1']
    #allocation4 [shape = 's32[1]{0}', space=sflag, size = 0x4, scoped, tag = 'scoped memory for tpu_custom_call.1']
    #allocation5 [shape = 'u8[4096]{0}', space=vmem, size = 0x1000, scoped, tag = 'output window, operand 0, single buffered']
    %16 = vsyncpa [#allocation3], 0
    %17 = vsyncpa [#allocation4], 0
    // Predicated region
    $region2: #{tpu_custom_call.1} parent=1 // pred_check
      _
    $region3: #{tpu_custom_call.1} parent=1 // pred_check_branch
      %19 = sbr.rel (0) target = $region5
    $region4: #{tpu_custom_call.1} parent=1 // pred_region
      _
    $region5: #{tpu_custom_call.1} parent=1 // pred_fallthru
      _
    // Predicated region
    $region6: #{tpu_custom_call.1} parent=1 // pred_check
      _
    $region7: #{tpu_custom_call.1} parent=1 // pred_check_branch
      %21 = sbr.rel (0) target = $region9
    $region8: #{tpu_custom_call.1} parent=1 // pred_region
      _
    $region9: #{tpu_custom_call.1} parent=1 // pred_fallthru
      _
    // Predicated region
    $region10: #{tpu_custom_call.1} parent=1 // pred_check
      _
    $region11: #{tpu_custom_call.1} parent=1 // pred_check_branch
      %23 = sbr.rel (0) target = $region13
    $region12: #{tpu_custom_call.1} parent=1 // pred_region
      _
    $region13: #{tpu_custom_call.1} parent=1 // pred_fallthru
      _
    // Predicated region
    $region14: #{tpu_custom_call.1} parent=1 // pred_check
      _
    $region15: #{tpu_custom_call.1} parent=1 // pred_check_branch
      %25 = sbr.rel (0) target = $region17
    $region16: #{tpu_custom_call.1} parent=1 // pred_region
      %s27 = ssub.s32 1536, 1536
      %28 = vsyncadd [#allocation3], %s27
      %s29 = sshll.u32 [#allocation2], 4
      %s30 = int_to_ptr.vmem [resolvable:$true] %s29
      %35 = dma.hbm_to_vmem [thread:$0]  %s3, 1536, %s30, [#allocation3], 64, 64, 4
    $region17: #{tpu_custom_call.1} parent=1 // pred_fallthru
      _
    // Predicated region
    $region18: #{tpu_custom_call.1} parent=1 // pred_check
      _
    $region19: #{tpu_custom_call.1} parent=1 // pred_check_branch
      %37 = sbr.rel (0) target = $region21
    $region20: #{tpu_custom_call.1} parent=1 // pred_region
      _
    $region21: #{tpu_custom_call.1} parent=1 // pred_fallthru
      _
    // Predicated region
    $region22: #{tpu_custom_call.1} parent=1 // pred_check
      _
    $region23: #{tpu_custom_call.1} parent=1 // pred_check_branch
      %39 = sbr.rel (0) target = $region25
    $region24: #{tpu_custom_call.1} parent=1 // pred_region
      _
    $region25: #{tpu_custom_call.1} parent=1 // pred_fallthru
      _
    // Predicated region
    $region26: #{tpu_custom_call.1} parent=1 // pred_check
      _
    $region27: #{tpu_custom_call.1} parent=1 // pred_check_branch
      %41 = sbr.rel (0) target = $region29
    $region28: #{tpu_custom_call.1} parent=1 // pred_region
      _
    $region29: #{tpu_custom_call.1} parent=1 // pred_fallthru
      _
    // Predicated region
    $region30: #{tpu_custom_call.1} parent=1 // pred_check
      _
    $region31: #{tpu_custom_call.1} parent=1 // pred_check_branch
      %43 = sbr.rel (0) target = $region33
    $region32: #{tpu_custom_call.1} parent=1 // pred_region
      _
    $region33: #{tpu_custom_call.1} parent=1 // pred_fallthru
      _
    // Predicated region
    $region34: #{tpu_custom_call.1} parent=1 // pred_check
      _
    $region35: #{tpu_custom_call.1} parent=1 // pred_check_branch
      %45 = sbr.rel (0) target = $region37
    $region36: #{tpu_custom_call.1} parent=1 // pred_region
      _
    $region37: #{tpu_custom_call.1} parent=1 // pred_fallthru
      _
    // Predicated region
    $region38: #{tpu_custom_call.1} parent=1 // pred_check
      _
    $region39: #{tpu_custom_call.1} parent=1 // pred_check_branch
      %47 = sbr.rel (0) target = $region41
    $region40: #{tpu_custom_call.1} parent=1 // pred_region
      _
    $region41: #{tpu_custom_call.1} parent=1 // pred_fallthru
      _
    // Predicated region
    $region42: #{tpu_custom_call.1} parent=1 // pred_check
      _
    $region43: #{tpu_custom_call.1} parent=1 // pred_check_branch
      %49 = sbr.rel (0) target = $region45
    $region44: #{tpu_custom_call.1} parent=1 // pred_region
      _
    $region45: #{tpu_custom_call.1} parent=1 // pred_fallthru
      _
    // Predicated region
    $region46: #{tpu_custom_call.1} parent=1 // pred_check
      _
    $region47: #{tpu_custom_call.1} parent=1 // pred_check_branch
      %51 = sbr.rel (0) target = $region49
    $region48: #{tpu_custom_call.1} parent=1 // pred_region
      %52 = dma.done [#allocation3], 1536
    $region49: #{tpu_custom_call.1} parent=1 // pred_fallthru
      _
    %v54 = vld [vmem:[%s0] sm:$0xff]
    %v55 = vld [vmem:[%s0 + $0x8] sm:$0xff]
    %v56 = vpack.c.bf16 %v54, %v54
    %v57 = vpack.c.bf16 %v55, %v55
    %v58 = vld [vmem:[%s1] sm:$0xf]
    %v59 = vld [vmem:[%s1 + $0x4] sm:$0xf]
    %v60 = vld [vmem:[%s1 + $0x8] sm:$0xf]
    %v61 = vld [vmem:[%s1 + $0xc] sm:$0xf]
    %v62 = vld [vmem:[%s1 + $0x10] sm:$0xf]
    %v63 = vld [vmem:[%s1 + $0x14] sm:$0xf]
    %v64 = vld [vmem:[%s1 + $0x18] sm:$0xf]
    %v65 = vld [vmem:[%s1 + $0x1c] sm:$0xf]
    %v66 = vld [vmem:[%s1 + $0x20] sm:$0xf]
    %v67 = vld [vmem:[%s1 + $0x24] sm:$0xf]
    %v68 = vld [vmem:[%s1 + $0x28] sm:$0xf]
    %v69 = vld [vmem:[%s1 + $0x2c] sm:$0xf]
    %v70 = vld [vmem:[%s1 + $0x30] sm:$0xf]
    %v71 = vld [vmem:[%s1 + $0x34] sm:$0xf]
    %v72 = vld [vmem:[%s1 + $0x38] sm:$0xf]
    %v73 = vld [vmem:[%s1 + $0x3c] sm:$0xf]
    %v74 = vld [vmem:[%s1 + $0x40] sm:$0xf]
    %v75 = vld [vmem:[%s1 + $0x44] sm:$0xf]
    %v76 = vld [vmem:[%s1 + $0x48] sm:$0xf]
    %v77 = vld [vmem:[%s1 + $0x4c] sm:$0xf]
    %v78 = vld [vmem:[%s1 + $0x50] sm:$0xf]
    %v79 = vld [vmem:[%s1 + $0x54] sm:$0xf]
    %v80 = vld [vmem:[%s1 + $0x58] sm:$0xf]
    %v81 = vld [vmem:[%s1 + $0x5c] sm:$0xf]
    %v82 = vld [vmem:[%s2] sm:$0x1]
    %v84 = vlaneseq
    %v85 = vshrl.u32 %v84, 7
    %v86 = vsub.s32 0, %v85
    %v87 = vrot.slane %v82, %v86
    %v113 = vunpack.c.l.b16 %v58
    %v114 = vunpack.c.l.b16 %v59
    %v115 = vunpack.c.l.b16 %v60
    %v116 = vunpack.c.l.b16 %v61
    %v117 = vunpack.c.l.b16 %v62
    %v118 = vunpack.c.l.b16 %v63
    %v119 = vunpack.c.l.b16 %v64
    %v120 = vunpack.c.l.b16 %v65
    %v121 = vunpack.c.l.b16 %v66
    %v122 = vunpack.c.l.b16 %v67
    %v123 = vunpack.c.l.b16 %v68
    %v124 = vunpack.c.l.b16 %v69
    %v125 = vunpack.c.l.b16 %v70
    %v126 = vunpack.c.l.b16 %v71
    %v127 = vunpack.c.l.b16 %v72
    %v128 = vunpack.c.l.b16 %v73
    %v129 = vunpack.c.l.b16 %v74
    %v130 = vunpack.c.l.b16 %v75
    %v131 = vunpack.c.l.b16 %v76
    %v132 = vunpack.c.l.b16 %v77
    %v133 = vunpack.c.l.b16 %v78
    %v134 = vunpack.c.l.b16 %v79
    %v135 = vunpack.c.l.b16 %v80
    %v136 = vunpack.c.l.b16 %v81
    %v137 = vpack.c.b16 %v114, %v113
    %v138 = vpack.c.b16 %v116, %v115
    %v139 = vpack.c.b16 %v118, %v117
    %v140 = vpack.c.b16 %v120, %v119
    %v141 = vpack.c.b16 %v122, %v121
    %v142 = vpack.c.b16 %v124, %v123
    %v143 = vpack.c.b16 %v126, %v125
    %v144 = vpack.c.b16 %v128, %v127
    %v145 = vpack.c.b16 %v130, %v129
    %v146 = vpack.c.b16 %v132, %v131
    %v147 = vpack.c.b16 %v134, %v133
    %v148 = vpack.c.b16 %v136, %v135
    %vm161 = vcmask 523264
    %v163 = vsel %vm161, %v57, 0
    %165 = vmatprep.subr.bf16.mxu0 0
    %166 = vmatpush1.bf16.msra.mxu0 %v137
    %167 = vmatprep.subr.bf16.mxu0 0
    %168 = vmatpush1.bf16.msra.mxu0 %v138
    %169 = vmatprep.subr.bf16.mxu0 0
    %170 = vmatpush1.bf16.msra.mxu0 %v139
    %171 = vmatprep.subr.bf16.mxu0 0
    %172 = vmatpush1.bf16.msra.mxu0 %v140
    %173 = vmatprep.subr.bf16.mxu0 0
    %174 = vmatpush1.bf16.msra.mxu0 %v141
    %175 = vmatprep.subr.bf16.mxu0 0
    %176 = vmatpush1.bf16.msra.mxu0 %v142
    %177 = vmatprep.subr.bf16.mxu0 0
    %178 = vmatpush1.bf16.msra.mxu0 %v143
    %179 = vmatprep.subr.bf16.mxu0 0
    %180 = vmatpush1.bf16.msra.mxu0 %v144
    %181 = vmatprep.subr.bf16.mxu0 0
    %182 = vmatpush1.bf16.msra.mxu0 %v145
    %183 = vmatprep.subr.bf16.mxu0 0
    %184 = vmatpush1.bf16.msra.mxu0 %v146
    %185 = vmatprep.subr.bf16.mxu0 0
    %186 = vmatpush1.bf16.msra.mxu0 %v147
    %187 = vmatprep.subr.bf16.mxu0 0
    %188 = vmatpush1.bf16.msra.mxu0 %v148
    %189 = vmatprep.subr.bf16.mxu0 0
    %190 = vmatpush1.bf16.msra.mxu0 0
    %191 = vmatprep.subr.bf16.mxu0 0
    %192 = vmatpush1.bf16.msra.mxu0 0
    %193 = vmatprep.subr.bf16.mxu0 0
    %194 = vmatpush1.bf16.msra.mxu0 0
    %195 = vmatprep.subr.bf16.mxu0 0
    %196 = vmatpush1.bf16.msra.mxu0 0
    %197 = vmatprep.mubr.bf16.mxu0 %v163
    %198 = vmatmul.mubr.bf16.gmra.mrb[0].mxu0 %v56
    %v199 = vpop.f32.mrb[0].mxu0
    %v200 = vadd.f32 %v87, %v199
    %v201 = vpop.f32.mrb[0].mxu0
    %v202 = vpop.f32.mrb[0].mxu0
    %v203 = vpop.f32.mrb[0].mxu0
    %204 = vdwg.mxu0
    %v205 = vpack.c.bf16 %v200, %v200
    %v206 = vld [vmem:[#allocation2] sm:$0xf]
    %v207 = vld [vmem:[#allocation2 + $0x4] sm:$0xf]
    %v208 = vld [vmem:[#allocation2 + $0x8] sm:$0xf]
    %v209 = vld [vmem:[#allocation2 + $0xc] sm:$0xf]
    %v210 = vld [vmem:[#allocation2 + $0x10] sm:$0xf]
    %v211 = vld [vmem:[#allocation2 + $0x14] sm:$0xf]
    %v212 = vld [vmem:[#allocation2 + $0x18] sm:$0xf]
    %v213 = vld [vmem:[#allocation2 + $0x1c] sm:$0xf]
    %v214 = vld [vmem:[%s4] sm:$0x1]
    %v216 = vlaneseq
    %v217 = vshrl.u32 %v216, 7
    %v218 = vsub.s32 0, %v217
    %v219 = vrot.slane %v214, %v218
    %v229 = vunpack.c.l.b16 %v206
    %v230 = vunpack.c.l.b16 %v207
    %v231 = vunpack.c.l.b16 %v208
    %v232 = vunpack.c.l.b16 %v209
    %v233 = vunpack.c.l.b16 %v210
    %v234 = vunpack.c.l.b16 %v211
    %v235 = vunpack.c.l.b16 %v212
    %v236 = vunpack.c.l.b16 %v213
    %v237 = vpack.c.b16 %v230, %v229
    %v238 = vpack.c.b16 %v232, %v231
    %v239 = vpack.c.b16 %v234, %v233
    %v240 = vpack.c.b16 %v236, %v235
    %v246 = vsel %vm161, %v205, 0
    %248 = vmatprep.subr.bf16.mxu0 0
    %249 = vmatpush1.bf16.msra.mxu0 %v237
    %250 = vmatprep.subr.bf16.mxu0 0
    %251 = vmatpush1.bf16.msra.mxu0 %v238
    %252 = vmatprep.subr.bf16.mxu0 0
    %253 = vmatpush1.bf16.msra.mxu0 %v239
    %254 = vmatprep.subr.bf16.mxu0 0
    %255 = vmatpush1.bf16.msra.mxu0 %v240
    %256 = vmatprep.subr.bf16.mxu0 0
    %257 = vmatpush1.bf16.msra.mxu0 0
    %258 = vmatprep.subr.bf16.mxu0 0
    %259 = vmatpush1.bf16.msra.mxu0 0
    %260 = vmatprep.subr.bf16.mxu0 0
    %261 = vmatpush1.bf16.msra.mxu0 0
    %262 = vmatprep.subr.bf16.mxu0 0
    %263 = vmatpush1.bf16.msra.mxu0 0
    %264 = vmatprep.subr.bf16.mxu0 0
    %265 = vmatpush1.bf16.msra.mxu0 0
    %266 = vmatprep.subr.bf16.mxu0 0
    %267 = vmatpush1.bf16.msra.mxu0 0
    %268 = vmatprep.subr.bf16.mxu0 0
    %269 = vmatpush1.bf16.msra.mxu0 0
    %270 = vmatprep.subr.bf16.mxu0 0
    %271 = vmatpush1.bf16.msra.mxu0 0
    %272 = vmatprep.subr.bf16.mxu0 0
    %273 = vmatpush1.bf16.msra.mxu0 0
    %274 = vmatprep.subr.bf16.mxu0 0
    %275 = vmatpush1.bf16.msra.mxu0 0
    %276 = vmatprep.subr.bf16.mxu0 0
    %277 = vmatpush1.bf16.msra.mxu0 0
    %278 = vmatprep.subr.bf16.mxu0 0
    %279 = vmatpush1.bf16.msra.mxu0 0
    %280 = vmatprep.mubr.bf16.mxu0 0
    %281 = vmatmul.mubr.bf16.gmra.mrb[0].mxu0 %v246
    %v282 = vpop.f32.mrb[0].mxu0
    %v283 = vadd.f32 %v219, %v282
    %v284 = vpop.f32.mrb[0].mxu0
    %v285 = vpop.f32.mrb[0].mxu0
    %v286 = vpop.f32.mrb[0].mxu0
    %287 = vdwg.mxu0
    %s288 = scalar_lea.vmem [#allocation2], 32
    %v289 = vld [vmem:[%s288] sm:$0xf]
    %v290 = vld [vmem:[%s288 + $0x4] sm:$0xf]
    %v291 = vld [vmem:[%s288 + $0x8] sm:$0xf]
    %v292 = vld [vmem:[%s288 + $0xc] sm:$0xf]
    %v293 = vld [vmem:[%s288 + $0x10] sm:$0xf]
    %v294 = vld [vmem:[%s288 + $0x14] sm:$0xf]
    %v295 = vld [vmem:[%s288 + $0x18] sm:$0xf]
    %v296 = vld [vmem:[%s288 + $0x1c] sm:$0xf]
    %s297 = scalar_lea.vmem %s4, 1
    %v298 = vld [vmem:[%s297] sm:$0x1]
    %v300 = vlaneseq
    %v301 = vshrl.u32 %v300, 7
    %v302 = vsub.s32 0, %v301
    %v303 = vrot.slane %v298, %v302
    %v313 = vunpack.c.l.b16 %v289
    %v314 = vunpack.c.l.b16 %v290
    %v315 = vunpack.c.l.b16 %v291
    %v316 = vunpack.c.l.b16 %v292
    %v317 = vunpack.c.l.b16 %v293
    %v318 = vunpack.c.l.b16 %v294
    %v319 = vunpack.c.l.b16 %v295
    %v320 = vunpack.c.l.b16 %v296
    %v321 = vpack.c.b16 %v314, %v313
    %v322 = vpack.c.b16 %v316, %v315
    %v323 = vpack.c.b16 %v318, %v317
    %v324 = vpack.c.b16 %v320, %v319
    %329 = vmatprep.subr.bf16.mxu0 0
    %330 = vmatpush1.bf16.msra.mxu0 %v321
    %331 = vmatprep.subr.bf16.mxu0 0
    %332 = vmatpush1.bf16.msra.mxu0 %v322
    %333 = vmatprep.subr.bf16.mxu0 0
    %334 = vmatpush1.bf16.msra.mxu0 %v323
    %335 = vmatprep.subr.bf16.mxu0 0
    %336 = vmatpush1.bf16.msra.mxu0 %v324
    %337 = vmatprep.subr.bf16.mxu0 0
    %338 = vmatpush1.bf16.msra.mxu0 0
    %339 = vmatprep.subr.bf16.mxu0 0
    %340 = vmatpush1.bf16.msra.mxu0 0
    %341 = vmatprep.subr.bf16.mxu0 0
    %342 = vmatpush1.bf16.msra.mxu0 0
    %343 = vmatprep.subr.bf16.mxu0 0
    %344 = vmatpush1.bf16.msra.mxu0 0
    %345 = vmatprep.subr.bf16.mxu0 0
    %346 = vmatpush1.bf16.msra.mxu0 0
    %347 = vmatprep.subr.bf16.mxu0 0
    %348 = vmatpush1.bf16.msra.mxu0 0
    %349 = vmatprep.subr.bf16.mxu0 0
    %350 = vmatpush1.bf16.msra.mxu0 0
    %351 = vmatprep.subr.bf16.mxu0 0
    %352 = vmatpush1.bf16.msra.mxu0 0
    %353 = vmatprep.subr.bf16.mxu0 0
    %354 = vmatpush1.bf16.msra.mxu0 0
    %355 = vmatprep.subr.bf16.mxu0 0
    %356 = vmatpush1.bf16.msra.mxu0 0
    %357 = vmatprep.subr.bf16.mxu0 0
    %358 = vmatpush1.bf16.msra.mxu0 0
    %359 = vmatprep.subr.bf16.mxu0 0
    %360 = vmatpush1.bf16.msra.mxu0 0
    %361 = vmatprep.mubr.bf16.mxu0 0
    %362 = vmatmul.mubr.bf16.gmra.mrb[0].mxu0 %v246
    %v363 = vpop.f32.mrb[0].mxu0
    %v364 = vadd.f32 %v303, %v363
    %v365 = vpop.f32.mrb[0].mxu0
    %v366 = vpop.f32.mrb[0].mxu0
    %v367 = vpop.f32.mrb[0].mxu0
    %368 = vdwg.mxu0
    %s369 = scalar_lea.vmem [#allocation2], 64
    %v370 = vld [vmem:[%s369] sm:$0xf]
    %v371 = vld [vmem:[%s369 + $0x4] sm:$0xf]
    %v372 = vld [vmem:[%s369 + $0x8] sm:$0xf]
    %v373 = vld [vmem:[%s369 + $0xc] sm:$0xf]
    %v374 = vld [vmem:[%s369 + $0x10] sm:$0xf]
    %v375 = vld [vmem:[%s369 + $0x14] sm:$0xf]
    %v376 = vld [vmem:[%s369 + $0x18] sm:$0xf]
    %v377 = vld [vmem:[%s369 + $0x1c] sm:$0xf]
    %s378 = scalar_lea.vmem %s4, 2
    %v379 = vld [vmem:[%s378] sm:$0x1]
    %v381 = vlaneseq
    %v382 = vshrl.u32 %v381, 7
    %v383 = vsub.s32 0, %v382
    %v384 = vrot.slane %v379, %v383
    %v394 = vunpack.c.l.b16 %v370
    %v395 = vunpack.c.l.b16 %v371
    %v396 = vunpack.c.l.b16 %v372
    %v397 = vunpack.c.l.b16 %v373
    %v398 = vunpack.c.l.b16 %v374
    %v399 = vunpack.c.l.b16 %v375
    %v400 = vunpack.c.l.b16 %v376
    %v401 = vunpack.c.l.b16 %v377
    %v402 = vpack.c.b16 %v395, %v394
    %v403 = vpack.c.b16 %v397, %v396
    %v404 = vpack.c.b16 %v399, %v398
    %v405 = vpack.c.b16 %v401, %v400
    %410 = vmatprep.subr.bf16.mxu0 0
    %411 = vmatpush1.bf16.msra.mxu0 %v402
    %412 = vmatprep.subr.bf16.mxu0 0
    %413 = vmatpush1.bf16.msra.mxu0 %v403
    %414 = vmatprep.subr.bf16.mxu0 0
    %415 = vmatpush1.bf16.msra.mxu0 %v404
    %416 = vmatprep.subr.bf16.mxu0 0
    %417 = vmatpush1.bf16.msra.mxu0 %v405
    %418 = vmatprep.subr.bf16.mxu0 0
    %419 = vmatpush1.bf16.msra.mxu0 0
    %420 = vmatprep.subr.bf16.mxu0 0
    %421 = vmatpush1.bf16.msra.mxu0 0
    %422 = vmatprep.subr.bf16.mxu0 0
    %423 = vmatpush1.bf16.msra.mxu0 0
    %424 = vmatprep.subr.bf16.mxu0 0
    %425 = vmatpush1.bf16.msra.mxu0 0
    %426 = vmatprep.subr.bf16.mxu0 0
    %427 = vmatpush1.bf16.msra.mxu0 0
    %428 = vmatprep.subr.bf16.mxu0 0
    %429 = vmatpush1.bf16.msra.mxu0 0
    %430 = vmatprep.subr.bf16.mxu0 0
    %431 = vmatpush1.bf16.msra.mxu0 0
    %432 = vmatprep.subr.bf16.mxu0 0
    %433 = vmatpush1.bf16.msra.mxu0 0
    %434 = vmatprep.subr.bf16.mxu0 0
    %435 = vmatpush1.bf16.msra.mxu0 0
    %436 = vmatprep.subr.bf16.mxu0 0
    %437 = vmatpush1.bf16.msra.mxu0 0
    %438 = vmatprep.subr.bf16.mxu0 0
    %439 = vmatpush1.bf16.msra.mxu0 0
    %440 = vmatprep.subr.bf16.mxu0 0
    %441 = vmatpush1.bf16.msra.mxu0 0
    %442 = vmatprep.mubr.bf16.mxu0 0
    %443 = vmatmul.mubr.bf16.gmra.mrb[0].mxu0 %v246
    %v444 = vpop.f32.mrb[0].mxu0
    %v445 = vadd.f32 %v384, %v444
    %v446 = vpop.f32.mrb[0].mxu0
    %v447 = vpop.f32.mrb[0].mxu0
    %v448 = vpop.f32.mrb[0].mxu0
    %449 = vdwg.mxu0
    %v451 = vcombine.high %v283, %v283
    %v454 = vcombine.high %v364, %v364
    %v457 = vcombine.high %v445, %v445
    %v459 = vlaneseq
    %v460 = vshrl.u32 %v459, 7
    %v461 = vsub.s32 0, %v460
    %v462 = vrot.slane %v364, %v461
    %v463 = vlaneseq
    %v464 = vshrl.u32 %v463, 7
    %v465 = vsub.s32 0, %v464
    %v466 = vrot.slane %v454, %v465
    %v467 = vmul.f32 %v283, %v462
    %v468 = vmul.f32 %v451, %v466
    %v469 = vlaneseq
    %v470 = vshrl.u32 %v469, 7
    %v471 = vsub.s32 1, %v470
    %v472 = vrot.slane %v364, %v471
    %v473 = vlaneseq
    %v474 = vshrl.u32 %v473, 7
    %v475 = vsub.s32 1, %v474
    %v476 = vrot.slane %v454, %v475
    %v477 = vmul.f32 %v283, %v472
    %v478 = vmul.f32 %v451, %v476
    %v479 = vlaneseq
    %v480 = vshrl.u32 %v479, 7
    %v481 = vsub.s32 2, %v480
    %v482 = vrot.slane %v364, %v481
    %v483 = vlaneseq
    %v484 = vshrl.u32 %v483, 7
    %v485 = vsub.s32 2, %v484
    %v486 = vrot.slane %v454, %v485
    %v487 = vmul.f32 %v283, %v482
    %v488 = vmul.f32 %v451, %v486
    %v489 = vlaneseq
    %v490 = vshrl.u32 %v489, 7
    %v491 = vsub.s32 3, %v490
    %v492 = vrot.slane %v364, %v491
    %v493 = vlaneseq
    %v494 = vshrl.u32 %v493, 7
    %v495 = vsub.s32 3, %v494
    %v496 = vrot.slane %v454, %v495
    %v497 = vmul.f32 %v283, %v492
    %v498 = vmul.f32 %v451, %v496
    %v501 = vcombine.low %v467, %v468
    %v504 = vcombine.low %v477, %v478
    %v507 = vcombine.low %v487, %v488
    %v510 = vcombine.low %v497, %v498
    %v511 = vld [vmem:[%s5] sm:$0xff]
    %v512 = vld [vmem:[%s5 + $0x8] sm:$0xff]
    %v513 = vld [vmem:[%s5 + $0x10] sm:$0xff]
    %v514 = vld [vmem:[%s5 + $0x18] sm:$0xff]
    %v515 = vld [vmem:[%s5 + $0x20] sm:$0xff]
    %v516 = vld [vmem:[%s5 + $0x28] sm:$0xff]
    %v517 = vld [vmem:[%s5 + $0x30] sm:$0xff]
    %v518 = vld [vmem:[%s5 + $0x38] sm:$0xff]
    %v519 = vsel %vm161, %v501, 0
    %v521 = vsel %vm161, %v504, 0
    %v523 = vsel %vm161, %v507, 0
    %v525 = vsel %vm161, %v510, 0
    %527 = vmatprep.subr.mxu0 0.0
    %528 = vmatpush1.msra.mxu0 %v511
    %529 = vmatprep.subr.mxu0 0.0
    %530 = vmatpush1.msra.mxu0 %v512
    %531 = vmatprep.subr.mxu0 0.0
    %532 = vmatpush1.msra.mxu0 %v513
    %533 = vmatprep.subr.mxu0 0.0
    %534 = vmatpush1.msra.mxu0 %v514
    %535 = vmatprep.subr.mxu0 0.0
    %536 = vmatpush1.msra.mxu0 %v515
    %537 = vmatprep.subr.mxu0 0.0
    %538 = vmatpush1.msra.mxu0 %v516
    %539 = vmatprep.subr.mxu0 0.0
    %540 = vmatpush1.msra.mxu0 %v517
    %541 = vmatprep.subr.mxu0 0.0
    %542 = vmatpush1.msra.mxu0 %v518
    %543 = vmatprep.subr.mxu0 0.0
    %544 = vmatpush1.msra.mxu0 0.0
    %545 = vmatprep.subr.mxu0 0.0
    %546 = vmatpush1.msra.mxu0 0.0
    %547 = vmatprep.subr.mxu0 0.0
    %548 = vmatpush1.msra.mxu0 0.0
    %549 = vmatprep.subr.mxu0 0.0
    %550 = vmatpush1.msra.mxu0 0.0
    %551 = vmatprep.subr.mxu0 0.0
    %552 = vmatpush1.msra.mxu0 0.0
    %553 = vmatprep.subr.mxu0 0.0
    %554 = vmatpush1.msra.mxu0 0.0
    %555 = vmatprep.subr.mxu0 0.0
    %556 = vmatpush1.msra.mxu0 0.0
    %557 = vmatprep.subr.mxu0 0.0
    %558 = vmatpush1.msra.mxu0 0.0
    %559 = vmatprep.subr.mxu0 0.0
    %560 = vmatpush1.msra.mxu0 0.0
    %561 = vmatprep.subr.mxu0 0.0
    %562 = vmatpush1.msra.mxu0 0.0
    %563 = vmatprep.subr.mxu0 0.0
    %564 = vmatpush1.msra.mxu0 0.0
    %565 = vmatprep.subr.mxu0 0.0
    %566 = vmatpush1.msra.mxu0 0.0
    %567 = vmatprep.subr.mxu0 0.0
    %568 = vmatpush1.msra.mxu0 0.0
    %569 = vmatprep.subr.mxu0 0.0
    %570 = vmatpush1.msra.mxu0 0.0
    %571 = vmatprep.subr.mxu0 0.0
    %572 = vmatpush1.msra.mxu0 0.0
    %573 = vmatprep.subr.mxu0 0.0
    %574 = vmatpush1.msra.mxu0 0.0
    %575 = vmatprep.subr.mxu0 0.0
    %576 = vmatpush1.msra.mxu0 0.0
    %577 = vmatprep.subr.mxu0 0.0
    %578 = vmatpush1.msra.mxu0 0.0
    %579 = vmatprep.subr.mxu0 0.0
    %580 = vmatpush1.msra.mxu0 0.0
    %581 = vmatprep.subr.mxu0 0.0
    %582 = vmatpush1.msra.mxu0 0.0
    %583 = vmatprep.subr.mxu0 0.0
    %584 = vmatpush1.msra.mxu0 0.0
    %585 = vmatprep.subr.mxu0 0.0
    %586 = vmatpush1.msra.mxu0 0.0
    %587 = vmatprep.subr.mxu0 0.0
    %588 = vmatpush1.msra.mxu0 0.0
    %589 = vmatprep.subr.mxu0 0.0
    %590 = vmatpush1.msra.mxu0 0.0
    %591 = vmatprep.mubr.f32.mxu0 0.0
    %592 = vmatmul.mubr.f32.gmra.mrb[0].mxu0 %v519
    %v593 = vpop.f32.mrb[0].mxu0
    %v594 = vadd.f32 0.0, %v593
    %v595 = vpop.f32.mrb[0].mxu0
    %596 = vmatprep.mubr.f32.mxu0 0.0
    %597 = vmatmul.mubr.f32.gmra.mrb[0].mxu0 %v521
    %v598 = vpop.f32.mrb[0].mxu0
    %v599 = vadd.f32 0.0, %v598
    %v600 = vpop.f32.mrb[0].mxu0
    %601 = vmatprep.mubr.f32.mxu0 0.0
    %602 = vmatmul.mubr.f32.gmra.mrb[0].mxu0 %v523
    %v603 = vpop.f32.mrb[0].mxu0
    %v604 = vadd.f32 0.0, %v603
    %v605 = vpop.f32.mrb[0].mxu0
    %606 = vmatprep.mubr.f32.mxu0 0.0
    %607 = vmatmul.mubr.f32.gmra.mrb[0].mxu0 %v525
    %v608 = vpop.f32.mrb[0].mxu0
    %v609 = vadd.f32 0.0, %v608
    %v610 = vpop.f32.mrb[0].mxu0
    %611 = vdwg.mxu0
    %v612 = vmax.f32 %v594, %v599
    %v613 = vmax.f32 %v612, %v604
    %v614 = vmax.f32 %v613, %v609
    %v615 = vsub.f32 %v594, %v614
    %v616 = vmul.f32 %v615, 1.442695
    %v617 = vpow.pop %v616
    %v618 = vsub.f32 %v599, %v614
    %v619 = vmul.f32 %v618, 1.442695
    %v620 = vpow.pop %v619
    %v621 = vsub.f32 %v604, %v614
    %v622 = vmul.f32 %v621, 1.442695
    %v623 = vpow.pop %v622
    %v624 = vsub.f32 %v609, %v614
    %v625 = vmul.f32 %v624, 1.442695
    %v626 = vpow.pop %v625
    %v627 = vadd.f32 %v617, %v620
    %v628 = vadd.f32 %v627, %v623
    %v629 = vadd.f32 %v628, %v626
    %v630 = vrcp.pop %v629
    %v631 = vmul.f32 %v617, %v630
    %v632 = vmul.f32 %v620, %v630
    %v633 = vmul.f32 %v623, %v630
    %v634 = vmul.f32 %v626, %v630
    %v635 = vld [vmem:[%s6] sm:$0xff]
    %vm636 = vcmask 64512
    %v638 = vsel %vm636, %v631, 0
    %v641 = vsel %vm636, %v632, 0
    %v644 = vsel %vm636, %v633, 0
    %v647 = vsel %vm636, %v634, 0
    %649 = vmatprep.subr.mxu0 0.0
    %650 = vmatpush1.msra.mxu0 %v635
    %651 = vmatprep.subr.mxu0 0.0
    %652 = vmatpush1.msra.mxu0 0.0
    %653 = vmatprep.subr.mxu0 0.0
    %654 = vmatpush1.msra.mxu0 0.0
    %655 = vmatprep.subr.mxu0 0.0
    %656 = vmatpush1.msra.mxu0 0.0
    %657 = vmatprep.subr.mxu0 0.0
    %658 = vmatpush1.msra.mxu0 0.0
    %659 = vmatprep.subr.mxu0 0.0
    %660 = vmatpush1.msra.mxu0 0.0
    %661 = vmatprep.subr.mxu0 0.0
    %662 = vmatpush1.msra.mxu0 0.0
    %663 = vmatprep.subr.mxu0 0.0
    %664 = vmatpush1.msra.mxu0 0.0
    %665 = vmatprep.subr.mxu0 0.0
    %666 = vmatpush1.msra.mxu0 0.0
    %667 = vmatprep.subr.mxu0 0.0
    %668 = vmatpush1.msra.mxu0 0.0
    %669 = vmatprep.subr.mxu0 0.0
    %670 = vmatpush1.msra.mxu0 0.0
    %671 = vmatprep.subr.mxu0 0.0
    %672 = vmatpush1.msra.mxu0 0.0
    %673 = vmatprep.subr.mxu0 0.0
    %674 = vmatpush1.msra.mxu0 0.0
    %675 = vmatprep.subr.mxu0 0.0
    %676 = vmatpush1.msra.mxu0 0.0
    %677 = vmatprep.subr.mxu0 0.0
    %678 = vmatpush1.msra.mxu0 0.0
    %679 = vmatprep.subr.mxu0 0.0
    %680 = vmatpush1.msra.mxu0 0.0
    %681 = vmatprep.subr.mxu0 0.0
    %682 = vmatpush1.msra.mxu0 0.0
    %683 = vmatprep.subr.mxu0 0.0
    %684 = vmatpush1.msra.mxu0 0.0
    %685 = vmatprep.subr.mxu0 0.0
    %686 = vmatpush1.msra.mxu0 0.0
    %687 = vmatprep.subr.mxu0 0.0
    %688 = vmatpush1.msra.mxu0 0.0
    %689 = vmatprep.subr.mxu0 0.0
    %690 = vmatpush1.msra.mxu0 0.0
    %691 = vmatprep.subr.mxu0 0.0
    %692 = vmatpush1.msra.mxu0 0.0
    %693 = vmatprep.subr.mxu0 0.0
    %694 = vmatpush1.msra.mxu0 0.0
    %695 = vmatprep.subr.mxu0 0.0
    %696 = vmatpush1.msra.mxu0 0.0
    %697 = vmatprep.subr.mxu0 0.0
    %698 = vmatpush1.msra.mxu0 0.0
    %699 = vmatprep.subr.mxu0 0.0
    %700 = vmatpush1.msra.mxu0 0.0
    %701 = vmatprep.subr.mxu0 0.0
    %702 = vmatpush1.msra.mxu0 0.0
    %703 = vmatprep.subr.mxu0 0.0
    %704 = vmatpush1.msra.mxu0 0.0
    %705 = vmatprep.subr.mxu0 0.0
    %706 = vmatpush1.msra.mxu0 0.0
    %707 = vmatprep.subr.mxu0 0.0
    %708 = vmatpush1.msra.mxu0 0.0
    %709 = vmatprep.subr.mxu0 0.0
    %710 = vmatpush1.msra.mxu0 0.0
    %711 = vmatprep.subr.mxu0 0.0
    %712 = vmatpush1.msra.mxu0 0.0
    %713 = vmatprep.mubr.f32.mxu0 0.0
    %714 = vmatmul.mubr.f32.gmra.mrb[0].mxu0 %v638
    %v715 = vpop.f32.mrb[0].mxu0
    %v716 = vadd.f32 0.0, %v715
    %v717 = vpop.f32.mrb[0].mxu0
    %718 = vmatprep.mubr.f32.mxu0 0.0
    %719 = vmatmul.mubr.f32.gmra.mrb[0].mxu0 %v641
    %v720 = vpop.f32.mrb[0].mxu0
    %v721 = vadd.f32 0.0, %v720
    %v722 = vpop.f32.mrb[0].mxu0
    %723 = vmatprep.mubr.f32.mxu0 0.0
    %724 = vmatmul.mubr.f32.gmra.mrb[0].mxu0 %v644
    %v725 = vpop.f32.mrb[0].mxu0
    %v726 = vadd.f32 0.0, %v725
    %v727 = vpop.f32.mrb[0].mxu0
    %728 = vmatprep.mubr.f32.mxu0 0.0
    %729 = vmatmul.mubr.f32.gmra.mrb[0].mxu0 %v647
    %v730 = vpop.f32.mrb[0].mxu0
    %v731 = vadd.f32 0.0, %v730
    %v732 = vpop.f32.mrb[0].mxu0
    %733 = vdwg.mxu0
    %v735 = vcombine.high %v716, %v716
    %v737 = vlaneseq
    %v738 = vshrl.u32 %v737, 7
    %v739 = vsub.s32 0, %v738
    %v740 = vrot.slane %v445, %v739
    %v741 = vlaneseq
    %v742 = vshrl.u32 %v741, 7
    %v743 = vsub.s32 0, %v742
    %v744 = vrot.slane %v457, %v743
    %v745 = vmul.f32 %v716, %v740
    %v746 = vmul.f32 %v735, %v744
    %v748 = vcombine.high %v721, %v721
    %v750 = vlaneseq
    %v751 = vshrl.u32 %v750, 7
    %v752 = vsub.s32 1, %v751
    %v753 = vrot.slane %v445, %v752
    %v754 = vlaneseq
    %v755 = vshrl.u32 %v754, 7
    %v756 = vsub.s32 1, %v755
    %v757 = vrot.slane %v457, %v756
    %v758 = vmul.f32 %v721, %v753
    %v759 = vmul.f32 %v748, %v757
    %v760 = vadd.f32 %v745, %v758
    %v761 = vadd.f32 %v746, %v759
    %v763 = vcombine.high %v726, %v726
    %v765 = vlaneseq
    %v766 = vshrl.u32 %v765, 7
    %v767 = vsub.s32 2, %v766
    %v768 = vrot.slane %v445, %v767
    %v769 = vlaneseq
    %v770 = vshrl.u32 %v769, 7
    %v771 = vsub.s32 2, %v770
    %v772 = vrot.slane %v457, %v771
    %v773 = vmul.f32 %v726, %v768
    %v774 = vmul.f32 %v763, %v772
    %v775 = vadd.f32 %v760, %v773
    %v776 = vadd.f32 %v761, %v774
    %v778 = vcombine.high %v731, %v731
    %v780 = vlaneseq
    %v781 = vshrl.u32 %v780, 7
    %v782 = vsub.s32 3, %v781
    %v783 = vrot.slane %v445, %v782
    %v784 = vlaneseq
    %v785 = vshrl.u32 %v784, 7
    %v786 = vsub.s32 3, %v785
    %v787 = vrot.slane %v457, %v786
    %v788 = vmul.f32 %v731, %v783
    %v789 = vmul.f32 %v778, %v787
    %v790 = vadd.f32 %v775, %v788
    %v791 = vadd.f32 %v776, %v789
    %v794 = vcombine.low %v790, %v791
    %v796 = vpack.c.bf16 %v794, %v794
    %v797 = vld [vmem:[%s7] sm:$0xf]
    %v798 = vld [vmem:[%s7 + $0x4] sm:$0xf]
    %v799 = vld [vmem:[%s7 + $0x8] sm:$0xf]
    %v800 = vld [vmem:[%s7 + $0xc] sm:$0xf]
    %v801 = vld [vmem:[%s7 + $0x10] sm:$0xf]
    %v802 = vld [vmem:[%s7 + $0x14] sm:$0xf]
    %v803 = vld [vmem:[%s7 + $0x18] sm:$0xf]
    %v804 = vld [vmem:[%s7 + $0x1c] sm:$0xf]
    %v805 = vld [vmem:[%s8] sm:$0x1]
    %v807 = vlaneseq
    %v808 = vshrl.u32 %v807, 7
    %v809 = vsub.s32 0, %v808
    %v810 = vrot.slane %v805, %v809
    %v820 = vunpack.c.l.b16 %v797
    %v821 = vunpack.c.l.b16 %v798
    %v822 = vunpack.c.l.b16 %v799
    %v823 = vunpack.c.l.b16 %v800
    %v824 = vunpack.c.l.b16 %v801
    %v825 = vunpack.c.l.b16 %v802
    %v826 = vunpack.c.l.b16 %v803
    %v827 = vunpack.c.l.b16 %v804
    %v828 = vpack.c.b16 %v821, %v820
    %v829 = vpack.c.b16 %v823, %v822
    %v830 = vpack.c.b16 %v825, %v824
    %v831 = vpack.c.b16 %v827, %v826
    %v837 = vsel %vm161, %v796, 0
    %839 = vmatprep.subr.bf16.mxu0 0
    %840 = vmatpush1.bf16.msra.mxu0 %v828
    %841 = vmatprep.subr.bf16.mxu0 0
    %842 = vmatpush1.bf16.msra.mxu0 %v829
    %843 = vmatprep.subr.bf16.mxu0 0
    %844 = vmatpush1.bf16.msra.mxu0 %v830
    %845 = vmatprep.subr.bf16.mxu0 0
    %846 = vmatpush1.bf16.msra.mxu0 %v831
    %847 = vmatprep.subr.bf16.mxu0 0
    %848 = vmatpush1.bf16.msra.mxu0 0
    %849 = vmatprep.subr.bf16.mxu0 0
    %850 = vmatpush1.bf16.msra.mxu0 0
    %851 = vmatprep.subr.bf16.mxu0 0
    %852 = vmatpush1.bf16.msra.mxu0 0
    %853 = vmatprep.subr.bf16.mxu0 0
    %854 = vmatpush1.bf16.msra.mxu0 0
    %855 = vmatprep.subr.bf16.mxu0 0
    %856 = vmatpush1.bf16.msra.mxu0 0
    %857 = vmatprep.subr.bf16.mxu0 0
    %858 = vmatpush1.bf16.msra.mxu0 0
    %859 = vmatprep.subr.bf16.mxu0 0
    %860 = vmatpush1.bf16.msra.mxu0 0
    %861 = vmatprep.subr.bf16.mxu0 0
    %862 = vmatpush1.bf16.msra.mxu0 0
    %863 = vmatprep.subr.bf16.mxu0 0
    %864 = vmatpush1.bf16.msra.mxu0 0
    %865 = vmatprep.subr.bf16.mxu0 0
    %866 = vmatpush1.bf16.msra.mxu0 0
    %867 = vmatprep.subr.bf16.mxu0 0
    %868 = vmatpush1.bf16.msra.mxu0 0
    %869 = vmatprep.subr.bf16.mxu0 0
    %870 = vmatpush1.bf16.msra.mxu0 0
    %871 = vmatprep.mubr.bf16.mxu0 0
    %872 = vmatmul.mubr.bf16.gmra.mrb[0].mxu0 %v837
    %v873 = vpop.f32.mrb[0].mxu0
    %v874 = vadd.f32 %v810, %v873
    %v875 = vpop.f32.mrb[0].mxu0
    %v876 = vpop.f32.mrb[0].mxu0
    %v877 = vpop.f32.mrb[0].mxu0
    %878 = vdwg.mxu0
    %v879 = vmax.f32 %v874, 0.0
    %v880 = vpack.c.bf16 %v879, %v879
    %v881 = vld [vmem:[%s9] sm:$0xf]
    %v882 = vld [vmem:[%s9 + $0x4] sm:$0xf]
    %v883 = vld [vmem:[%s9 + $0x8] sm:$0xf]
    %v884 = vld [vmem:[%s9 + $0xc] sm:$0xf]
    %v885 = vld [vmem:[%s9 + $0x10] sm:$0xf]
    %v886 = vld [vmem:[%s9 + $0x14] sm:$0xf]
    %v887 = vld [vmem:[%s9 + $0x18] sm:$0xf]
    %v888 = vld [vmem:[%s9 + $0x1c] sm:$0xf]
    %v889 = vld [vmem:[%s9 + $0x20] sm:$0xf]
    %v890 = vld [vmem:[%s9 + $0x24] sm:$0xf]
    %v891 = vld [vmem:[%s9 + $0x28] sm:$0xf]
    %v892 = vld [vmem:[%s9 + $0x2c] sm:$0xf]
    %v893 = vld [vmem:[%s9 + $0x30] sm:$0xf]
    %v894 = vld [vmem:[%s9 + $0x34] sm:$0xf]
    %v895 = vld [vmem:[%s9 + $0x38] sm:$0xf]
    %v896 = vld [vmem:[%s9 + $0x3c] sm:$0xf]
    %v897 = vld [vmem:[%s10] sm:$0x1]
    %v899 = vlaneseq
    %v900 = vshrl.u32 %v899, 7
    %v901 = vsub.s32 0, %v900
    %v902 = vrot.slane %v897, %v901
    %v920 = vunpack.c.l.b16 %v881
    %v921 = vunpack.c.l.b16 %v882
    %v922 = vunpack.c.l.b16 %v883
    %v923 = vunpack.c.l.b16 %v884
    %v924 = vunpack.c.l.b16 %v885
    %v925 = vunpack.c.l.b16 %v886
    %v926 = vunpack.c.l.b16 %v887
    %v927 = vunpack.c.l.b16 %v888
    %v928 = vunpack.c.l.b16 %v889
    %v929 = vunpack.c.l.b16 %v890
    %v930 = vunpack.c.l.b16 %v891
    %v931 = vunpack.c.l.b16 %v892
    %v932 = vunpack.c.l.b16 %v893
    %v933 = vunpack.c.l.b16 %v894
    %v934 = vunpack.c.l.b16 %v895
    %v935 = vunpack.c.l.b16 %v896
    %v936 = vpack.c.b16 %v921, %v920
    %v937 = vpack.c.b16 %v923, %v922
    %v938 = vpack.c.b16 %v925, %v924
    %v939 = vpack.c.b16 %v927, %v926
    %v940 = vpack.c.b16 %v929, %v928
    %v941 = vpack.c.b16 %v931, %v930
    %v942 = vpack.c.b16 %v933, %v932
    %v943 = vpack.c.b16 %v935, %v934
    %952 = vmatprep.subr.bf16.mxu0 0
    %953 = vmatpush1.bf16.msra.mxu0 %v936
    %954 = vmatprep.subr.bf16.mxu0 0
    %955 = vmatpush1.bf16.msra.mxu0 %v937
    %956 = vmatprep.subr.bf16.mxu0 0
    %957 = vmatpush1.bf16.msra.mxu0 %v938
    %958 = vmatprep.subr.bf16.mxu0 0
    %959 = vmatpush1.bf16.msra.mxu0 %v939
    %960 = vmatprep.subr.bf16.mxu0 0
    %961 = vmatpush1.bf16.msra.mxu0 %v940
    %962 = vmatprep.subr.bf16.mxu0 0
    %963 = vmatpush1.bf16.msra.mxu0 %v941
    %964 = vmatprep.subr.bf16.mxu0 0
    %965 = vmatpush1.bf16.msra.mxu0 %v942
    %966 = vmatprep.subr.bf16.mxu0 0
    %967 = vmatpush1.bf16.msra.mxu0 %v943
    %968 = vmatprep.subr.bf16.mxu0 0
    %969 = vmatpush1.bf16.msra.mxu0 0
    %970 = vmatprep.subr.bf16.mxu0 0
    %971 = vmatpush1.bf16.msra.mxu0 0
    %972 = vmatprep.subr.bf16.mxu0 0
    %973 = vmatpush1.bf16.msra.mxu0 0
    %974 = vmatprep.subr.bf16.mxu0 0
    %975 = vmatpush1.bf16.msra.mxu0 0
    %976 = vmatprep.subr.bf16.mxu0 0
    %977 = vmatpush1.bf16.msra.mxu0 0
    %978 = vmatprep.subr.bf16.mxu0 0
    %979 = vmatpush1.bf16.msra.mxu0 0
    %980 = vmatprep.subr.bf16.mxu0 0
    %981 = vmatpush1.bf16.msra.mxu0 0
    %982 = vmatprep.subr.bf16.mxu0 0
    %983 = vmatpush1.bf16.msra.mxu0 0
    %984 = vmatprep.mubr.bf16.mxu0 0
    %985 = vmatmul.mubr.bf16.gmra.mrb[0].mxu0 %v880
    %v986 = vpop.f32.mrb[0].mxu0
    %v987 = vadd.f32 %v902, %v986
    %v988 = vpop.f32.mrb[0].mxu0
    %v989 = vpop.f32.mrb[0].mxu0
    %v990 = vpop.f32.mrb[0].mxu0
    %991 = vdwg.mxu0
    %v992 = vmax.f32 %v987, 0.0
    %v993 = vpack.c.bf16 %v992, %v992
    %s994 = scalar_lea.vmem %s9, 64
    %v995 = vld [vmem:[%s994] sm:$0xf]
    %v996 = vld [vmem:[%s994 + $0x4] sm:$0xf]
    %v997 = vld [vmem:[%s994 + $0x8] sm:$0xf]
    %v998 = vld [vmem:[%s994 + $0xc] sm:$0xf]
    %v999 = vld [vmem:[%s994 + $0x10] sm:$0xf]
    %v1000 = vld [vmem:[%s994 + $0x14] sm:$0xf]
    %v1001 = vld [vmem:[%s994 + $0x18] sm:$0xf]
    %v1002 = vld [vmem:[%s994 + $0x1c] sm:$0xf]
    %v1003 = vld [vmem:[%s994 + $0x20] sm:$0xf]
    %v1004 = vld [vmem:[%s994 + $0x24] sm:$0xf]
    %v1005 = vld [vmem:[%s994 + $0x28] sm:$0xf]
    %v1006 = vld [vmem:[%s994 + $0x2c] sm:$0xf]
    %v1007 = vld [vmem:[%s994 + $0x30] sm:$0xf]
    %v1008 = vld [vmem:[%s994 + $0x34] sm:$0xf]
    %v1009 = vld [vmem:[%s994 + $0x38] sm:$0xf]
    %v1010 = vld [vmem:[%s994 + $0x3c] sm:$0xf]
    %s1011 = scalar_lea.vmem %s10, 1
    %v1012 = vld [vmem:[%s1011] sm:$0x1]
    %v1014 = vlaneseq
    %v1015 = vshrl.u32 %v1014, 7
    %v1016 = vsub.s32 0, %v1015
    %v1017 = vrot.slane %v1012, %v1016
    %v1035 = vunpack.c.l.b16 %v995
    %v1036 = vunpack.c.l.b16 %v996
    %v1037 = vunpack.c.l.b16 %v997
    %v1038 = vunpack.c.l.b16 %v998
    %v1039 = vunpack.c.l.b16 %v999
    %v1040 = vunpack.c.l.b16 %v1000
    %v1041 = vunpack.c.l.b16 %v1001
    %v1042 = vunpack.c.l.b16 %v1002
    %v1043 = vunpack.c.l.b16 %v1003
    %v1044 = vunpack.c.l.b16 %v1004
    %v1045 = vunpack.c.l.b16 %v1005
    %v1046 = vunpack.c.l.b16 %v1006
    %v1047 = vunpack.c.l.b16 %v1007
    %v1048 = vunpack.c.l.b16 %v1008
    %v1049 = vunpack.c.l.b16 %v1009
    %v1050 = vunpack.c.l.b16 %v1010
    %v1051 = vpack.c.b16 %v1036, %v1035
    %v1052 = vpack.c.b16 %v1038, %v1037
    %v1053 = vpack.c.b16 %v1040, %v1039
    %v1054 = vpack.c.b16 %v1042, %v1041
    %v1055 = vpack.c.b16 %v1044, %v1043
    %v1056 = vpack.c.b16 %v1046, %v1045
    %v1057 = vpack.c.b16 %v1048, %v1047
    %v1058 = vpack.c.b16 %v1050, %v1049
    %1067 = vmatprep.subr.bf16.mxu0 0
    %1068 = vmatpush1.bf16.msra.mxu0 %v1051
    %1069 = vmatprep.subr.bf16.mxu0 0
    %1070 = vmatpush1.bf16.msra.mxu0 %v1052
    %1071 = vmatprep.subr.bf16.mxu0 0
    %1072 = vmatpush1.bf16.msra.mxu0 %v1053
    %1073 = vmatprep.subr.bf16.mxu0 0
    %1074 = vmatpush1.bf16.msra.mxu0 %v1054
    %1075 = vmatprep.subr.bf16.mxu0 0
    %1076 = vmatpush1.bf16.msra.mxu0 %v1055
    %1077 = vmatprep.subr.bf16.mxu0 0
    %1078 = vmatpush1.bf16.msra.mxu0 %v1056
    %1079 = vmatprep.subr.bf16.mxu0 0
    %1080 = vmatpush1.bf16.msra.mxu0 %v1057
    %1081 = vmatprep.subr.bf16.mxu0 0
    %1082 = vmatpush1.bf16.msra.mxu0 %v1058
    %1083 = vmatprep.subr.bf16.mxu0 0
    %1084 = vmatpush1.bf16.msra.mxu0 0
    %1085 = vmatprep.subr.bf16.mxu0 0
    %1086 = vmatpush1.bf16.msra.mxu0 0
    %1087 = vmatprep.subr.bf16.mxu0 0
    %1088 = vmatpush1.bf16.msra.mxu0 0
    %1089 = vmatprep.subr.bf16.mxu0 0
    %1090 = vmatpush1.bf16.msra.mxu0 0
    %1091 = vmatprep.subr.bf16.mxu0 0
    %1092 = vmatpush1.bf16.msra.mxu0 0
    %1093 = vmatprep.subr.bf16.mxu0 0
    %1094 = vmatpush1.bf16.msra.mxu0 0
    %1095 = vmatprep.subr.bf16.mxu0 0
    %1096 = vmatpush1.bf16.msra.mxu0 0
    %1097 = vmatprep.subr.bf16.mxu0 0
    %1098 = vmatpush1.bf16.msra.mxu0 0
    %1099 = vmatprep.mubr.bf16.mxu0 0
    %1100 = vmatmul.mubr.bf16.gmra.mrb[0].mxu0 %v993
    %v1101 = vpop.f32.mrb[0].mxu0
    %v1102 = vadd.f32 %v1017, %v1101
    %v1103 = vpop.f32.mrb[0].mxu0
    %v1104 = vpop.f32.mrb[0].mxu0
    %v1105 = vpop.f32.mrb[0].mxu0
    %1106 = vdwg.mxu0
    %v1107 = vmax.f32 %v1102, 0.0
    %v1108 = vpack.c.bf16 %v1107, %v1107
    %s1109 = scalar_lea.vmem %s9, 128
    %v1110 = vld [vmem:[%s1109] sm:$0xf]
    %v1111 = vld [vmem:[%s1109 + $0x4] sm:$0xf]
    %v1112 = vld [vmem:[%s1109 + $0x8] sm:$0xf]
    %v1113 = vld [vmem:[%s1109 + $0xc] sm:$0xf]
    %v1114 = vld [vmem:[%s1109 + $0x10] sm:$0xf]
    %v1115 = vld [vmem:[%s1109 + $0x14] sm:$0xf]
    %v1116 = vld [vmem:[%s1109 + $0x18] sm:$0xf]
    %v1117 = vld [vmem:[%s1109 + $0x1c] sm:$0xf]
    %v1118 = vld [vmem:[%s1109 + $0x20] sm:$0xf]
    %v1119 = vld [vmem:[%s1109 + $0x24] sm:$0xf]
    %v1120 = vld [vmem:[%s1109 + $0x28] sm:$0xf]
    %v1121 = vld [vmem:[%s1109 + $0x2c] sm:$0xf]
    %v1122 = vld [vmem:[%s1109 + $0x30] sm:$0xf]
    %v1123 = vld [vmem:[%s1109 + $0x34] sm:$0xf]
    %v1124 = vld [vmem:[%s1109 + $0x38] sm:$0xf]
    %v1125 = vld [vmem:[%s1109 + $0x3c] sm:$0xf]
    %s1126 = scalar_lea.vmem %s10, 2
    %v1127 = vld [vmem:[%s1126] sm:$0x1]
    %v1129 = vlaneseq
    %v1130 = vshrl.u32 %v1129, 7
    %v1131 = vsub.s32 0, %v1130
    %v1132 = vrot.slane %v1127, %v1131
    %v1150 = vunpack.c.l.b16 %v1110
    %v1151 = vunpack.c.l.b16 %v1111
    %v1152 = vunpack.c.l.b16 %v1112
    %v1153 = vunpack.c.l.b16 %v1113
    %v1154 = vunpack.c.l.b16 %v1114
    %v1155 = vunpack.c.l.b16 %v1115
    %v1156 = vunpack.c.l.b16 %v1116
    %v1157 = vunpack.c.l.b16 %v1117
    %v1158 = vunpack.c.l.b16 %v1118
    %v1159 = vunpack.c.l.b16 %v1119
    %v1160 = vunpack.c.l.b16 %v1120
    %v1161 = vunpack.c.l.b16 %v1121
    %v1162 = vunpack.c.l.b16 %v1122
    %v1163 = vunpack.c.l.b16 %v1123
    %v1164 = vunpack.c.l.b16 %v1124
    %v1165 = vunpack.c.l.b16 %v1125
    %v1166 = vpack.c.b16 %v1151, %v1150
    %v1167 = vpack.c.b16 %v1153, %v1152
    %v1168 = vpack.c.b16 %v1155, %v1154
    %v1169 = vpack.c.b16 %v1157, %v1156
    %v1170 = vpack.c.b16 %v1159, %v1158
    %v1171 = vpack.c.b16 %v1161, %v1160
    %v1172 = vpack.c.b16 %v1163, %v1162
    %v1173 = vpack.c.b16 %v1165, %v1164
    %1182 = vmatprep.subr.bf16.mxu0 0
    %1183 = vmatpush1.bf16.msra.mxu0 %v1166
    %1184 = vmatprep.subr.bf16.mxu0 0
    %1185 = vmatpush1.bf16.msra.mxu0 %v1167
    %1186 = vmatprep.subr.bf16.mxu0 0
    %1187 = vmatpush1.bf16.msra.mxu0 %v1168
    %1188 = vmatprep.subr.bf16.mxu0 0
    %1189 = vmatpush1.bf16.msra.mxu0 %v1169
    %1190 = vmatprep.subr.bf16.mxu0 0
    %1191 = vmatpush1.bf16.msra.mxu0 %v1170
    %1192 = vmatprep.subr.bf16.mxu0 0
    %1193 = vmatpush1.bf16.msra.mxu0 %v1171
    %1194 = vmatprep.subr.bf16.mxu0 0
    %1195 = vmatpush1.bf16.msra.mxu0 %v1172
    %1196 = vmatprep.subr.bf16.mxu0 0
    %1197 = vmatpush1.bf16.msra.mxu0 %v1173
    %1198 = vmatprep.subr.bf16.mxu0 0
    %1199 = vmatpush1.bf16.msra.mxu0 0
    %1200 = vmatprep.subr.bf16.mxu0 0
    %1201 = vmatpush1.bf16.msra.mxu0 0
    %1202 = vmatprep.subr.bf16.mxu0 0
    %1203 = vmatpush1.bf16.msra.mxu0 0
    %1204 = vmatprep.subr.bf16.mxu0 0
    %1205 = vmatpush1.bf16.msra.mxu0 0
    %1206 = vmatprep.subr.bf16.mxu0 0
    %1207 = vmatpush1.bf16.msra.mxu0 0
    %1208 = vmatprep.subr.bf16.mxu0 0
    %1209 = vmatpush1.bf16.msra.mxu0 0
    %1210 = vmatprep.subr.bf16.mxu0 0
    %1211 = vmatpush1.bf16.msra.mxu0 0
    %1212 = vmatprep.subr.bf16.mxu0 0
    %1213 = vmatpush1.bf16.msra.mxu0 0
    %1214 = vmatprep.mubr.bf16.mxu0 0
    %1215 = vmatmul.mubr.bf16.gmra.mrb[0].mxu0 %v1108
    %v1216 = vpop.f32.mrb[0].mxu0
    %v1217 = vadd.f32 %v1132, %v1216
    %v1218 = vpop.f32.mrb[0].mxu0
    %v1219 = vpop.f32.mrb[0].mxu0
    %v1220 = vpop.f32.mrb[0].mxu0
    %1221 = vdwg.mxu0
    %1222 = vst [vmem:[#allocation5] sm:$0xff] %v1217
    // Predicated region
    $region50: #{tpu_custom_call.1} parent=1 // pred_check
      _
    $region51: #{tpu_custom_call.1} parent=1 // pred_check_branch
      %1224 = sbr.rel (0) target = $region53
    $region52: #{tpu_custom_call.1} parent=1 // pred_region
      %s1226 = ssub.s32 128, 128
      %1227 = vsyncadd [#allocation4], %s1226
      %s1229 = sshll.u32 [#allocation5], 4
      %s1230 = int_to_ptr.vmem [resolvable:$true] %s1229
      %1232 = dma.vmem_to_hbm [thread:$0]  %s1230, 128, %s11, [#allocation4]
    $region53: #{tpu_custom_call.1} parent=1 // pred_fallthru
      _
    // Predicated region
    $region54: #{tpu_custom_call.1} parent=1 // pred_check
      _
    $region55: #{tpu_custom_call.1} parent=1 // pred_check_branch
      %1234 = sbr.rel (0) target = $region57
    $region56: #{tpu_custom_call.1} parent=1 // pred_region
      %1235 = dma.done [#allocation4], 128
    $region57: #{tpu_custom_call.1} parent=1 // pred_fallthru
      _
    %1236 = vsyncpa [#allocation3], 1
    %1237 = vsyncpa [#allocation4], 1

</llo_original>
